<compile_context>
chip_gen: v6e
topology: v6e:2x2x1
jax: 0.10.0
libtpu: 0.0.40
codegen_flags: <defaults>
</compile_context>

<pallas_src>
import math

import jax
import jax.numpy as jnp
from jax.experimental import pallas as pl
from jax.experimental.pallas import tpu as pltpu

_EPS = 1e-8
_NOISE_SCALE = 1e-4
_SQRT2 = math.sqrt(2.0)


# --------------------------------------------------------------------------
# Kernel: Hartley point normalization + DLT Gram matrix G = A^T A (+ noise)
# Everything is laid out with batch on the lane (last) axis.
# --------------------------------------------------------------------------
def _dlt_gram_kernel(xa_ref, xb_ref, noise_ref, g_ref):
    # xa_ref, xb_ref: (2, N, B)  [x/y coordinate, point index, batch(lanes)]
    # noise_ref:      (9, 2N, B)
    # g_ref:          (9, 9, B)
    xa = xa_ref[...]
    xb = xb_ref[...]

    # TODO(synk): normalize_points() is not shown in the reference file; the
    # standard Hartley isotropic normalization (zero mean, mean distance
    # sqrt(2)) used by that repo is implemented here and mirrored in the
    # wrapper for TA / TB^-1.
    def normalize(pts):
        mean = jnp.mean(pts, axis=1, keepdims=True)                     # (2,1,B)
        centered = pts - mean                                           # (2,N,B)
        dist = jnp.sqrt(jnp.sum(centered * centered, axis=0,
                                keepdims=True))                         # (1,N,B)
        mean_dist = jnp.mean(dist, axis=1, keepdims=True)               # (1,1,B)
        scale = jnp.float32(_SQRT2) / (mean_dist + _EPS)                # (1,1,B)
        return centered * scale

    xan = normalize(xa)
    xbn = normalize(xb)

    x1, y1 = xan[0], xan[1]                                             # (N, B)
    x2, y2 = xbn[0], xbn[1]
    ones = jnp.ones_like(x1)
    zeros = jnp.zeros_like(x1)

    # A^T layout (9, 2N, B): columns of the DLT matrix as rows; the row order
    # of A (ax block first, then ay block) does not change A^T A.
    at = jnp.stack([
        jnp.concatenate([zeros, x1], axis=0),
        jnp.concatenate([zeros, y1], axis=0),
        jnp.concatenate([zeros, ones], axis=0),
        jnp.concatenate([-x1, zeros], axis=0),
        jnp.concatenate([-y1, zeros], axis=0),
        jnp.concatenate([-ones, zeros], axis=0),
        jnp.concatenate([y2 * x1, -x2 * x1], axis=0),
        jnp.concatenate([y2 * y1, -x2 * y1], axis=0),
        jnp.concatenate([y2, -x2], axis=0),
    ], axis=0)                                                          # (9,2N,B)

    # A = A + 1e-4 * randn(A.shape); noise is drawn in the wrapper and
    # streamed in lane-dense (in-kernel PRNG has no interpret/CPU lowering).
    at = at + jnp.float32(_NOISE_SCALE) * noise_ref[...]

    # G = A^T A on the VPU: 45 upper-triangular entries (symmetry exploited),
    # each an elementwise multiply + sublane reduction over the 2N rows.
    cols = [at[i] for i in range(9)]                                    # (2N, B)
    tri = {}
    for i in range(9):
        for j in range(i, 9):
            tri[(i, j)] = jnp.sum(cols[i] * cols[j], axis=0,
                                  keepdims=True)                        # (1, B)
    rows = [
        jnp.concatenate([tri[(min(i, j), max(i, j))] for j in range(9)], axis=0)
        for i in range(9)
    ]                                                                   # (9, B) x9
    g_ref[...] = jnp.stack(rows, axis=0)                                # (9,9,B)


# --------------------------------------------------------------------------
# Wrapper: Pallas Gram kernel -> batched 9x9 eigh -> de-normalize (plain jnp)
# --------------------------------------------------------------------------
def _hartley_stats(pts):
    # pts: (B, N, 2) -> mean_x, mean_y, scale (each (B,)); same formula as the
    # in-kernel normalization.
    mean = jnp.mean(pts, axis=1)                                        # (B, 2)
    centered = pts - mean[:, None, :]
    dist = jnp.sqrt(jnp.sum(centered * centered, axis=2))               # (B, N)
    mean_dist = jnp.mean(dist, axis=1)                                  # (B,)
    scale = jnp.float32(_SQRT2) / (mean_dist + _EPS)
    return mean[:, 0], mean[:, 1], scale


def tensor_dlt(xA, xB, noise_key):
    B, N, _ = xA.shape
    xA = xA.astype(jnp.float32)
    xB = xB.astype(jnp.float32)

    # Lane-dense layout: batch on the last (128-lane) axis.
    xa_t = jnp.transpose(xA, (2, 1, 0))                                 # (2, N, B)
    xb_t = jnp.transpose(xB, (2, 1, 0))                                 # (2, N, B)
    noise = jax.random.normal(noise_key, (9, 2 * N, B), dtype=jnp.float32)

    gram_t = pl.pallas_call(
        _dlt_gram_kernel,
        grid=(1,),
        in_specs=[
            pl.BlockSpec((2, N, B), lambda i: (0, 0, 0)),
            pl.BlockSpec((2, N, B), lambda i: (0, 0, 0)),
            pl.BlockSpec((9, 2 * N, B), lambda i: (0, 0, 0)),
        ],
        out_specs=pl.BlockSpec((9, 9, B), lambda i: (0, 0, 0)),
        out_shape=jax.ShapeDtypeStruct((9, 9, B), jnp.float32),
        compiler_params=pltpu.CompilerParams(
            dimension_semantics=("arbitrary",)),
    )(xa_t, xb_t, noise)

    gram = jnp.transpose(gram_t, (2, 0, 1))                             # (B, 9, 9)

    # torch.svd(A).V[..., -1] == smallest-eigenvalue eigenvector of G = A^T A
    # (up to sign; sign cancels in the final H / H[2,2] scaling).
    # TODO(synk): the torch try/except SVD-convergence fallback is not
    # representable in traced JAX and is omitted.
    _, evecs = jnp.linalg.eigh(gram)          # eigenvalues ascending
    Hn = evecs[:, :, 0].reshape(B, 3, 3)

    # De-normalization H = TB^-1 @ (Hn @ TA) and final scaling, fused by XLA.
    ma_x, ma_y, sa = _hartley_stats(xA)
    mb_x, mb_y, sb = _hartley_stats(xB)
    z = jnp.zeros_like(sa)
    o = jnp.ones_like(sa)

    TA = jnp.stack([
        jnp.stack([sa, z, -sa * ma_x], axis=-1),
        jnp.stack([z, sa, -sa * ma_y], axis=-1),
        jnp.stack([z, z, o], axis=-1),
    ], axis=-2)                                                         # (B,3,3)
    TB_inv = jnp.stack([
        jnp.stack([1.0 / sb, z, mb_x], axis=-1),
        jnp.stack([z, 1.0 / sb, mb_y], axis=-1),
        jnp.stack([z, z, o], axis=-1),
    ], axis=-2)                                                         # (B,3,3)

    H = TB_inv @ (Hn @ TA)
    H = H / (H[:, 2:3, 2:3] + _EPS)
    return H


# TODO(synk): the conv/BN/ReLU backbone + regression head (self.model /
# self.regress) and the STN affine_grid / grid_sample warp of the original
# module map to standard dense XLA ops (conv, gather) and are not expressed as
# Pallas kernels here; this file implements the TensorDLT stage of the forward.


if __name__ == "__main__":
    key = jax.random.PRNGKey(0)
    k1, k2, k3 = jax.random.split(key, 3)

    B, N = 2, 4  # 4 corner correspondences per batch item (standard DLT input)
    base = jnp.array([[0.0, 0.0], [32.0, 0.0], [32.0, 32.0], [0.0, 32.0]],
                     dtype=jnp.float32)
    xA = base[None, :, :] + 4.0 * jax.random.normal(k1, (B, N, 2),
                                                    dtype=jnp.float32)
    xB = base[None, :, :] + 4.0 * jax.random.normal(k2, (B, N, 2),
                                                    dtype=jnp.float32)

    H = jax.jit(tensor_dlt)(xA, xB, k3)
    H = jax.block_until_ready(H)

    assert H.shape == (B, 3, 3)
    assert bool(jnp.all(jnp.isfinite(H)))
    print("KERNEL_OK")
</pallas_src>

<mosaic_0001>
module attributes {stable_mosaic.version = 11 : i64} {
  func.func @_dlt_gram_kernel(%arg0: i32, %arg1: memref<2x4x2xf32, #tpu.memory_space<vmem>>, %arg2: memref<2x4x2xf32, #tpu.memory_space<vmem>>, %arg3: memref<9x8x2xf32, #tpu.memory_space<vmem>>, %arg4: memref<9x9x2xf32, #tpu.memory_space<vmem>>) attributes {dimension_semantics = [#tpu.dimension_semantics<arbitrary>], iteration_bounds = array<i64: 1>, scalar_prefetch = 0 : i64, scratch_operands = 0 : i64, tpu.core_type = #tpu.core_type<tc>, window_params = [{pipeline_mode = #tpu.pipeline_mode<synchronous>, transform_indices = @transform_0, window_bounds = array<i64: 2, 4, 2>}, {pipeline_mode = #tpu.pipeline_mode<synchronous>, transform_indices = @transform_1, window_bounds = array<i64: 2, 4, 2>}, {pipeline_mode = #tpu.pipeline_mode<synchronous>, transform_indices = @transform_2, window_bounds = array<i64: 9, 8, 2>}, {pipeline_mode = #tpu.pipeline_mode<synchronous>, transform_indices = @transform_3, window_bounds = array<i64: 9, 9, 2>}]} {
    %c0 = arith.constant 0 : index
    %c0_0 = arith.constant 0 : index
    %c0_1 = arith.constant 0 : index
    %0 = vector.load %arg1[%c0, %c0_0, %c0_1] : memref<2x4x2xf32, #tpu.memory_space<vmem>>, vector<2x4x2xf32>
    %c0_2 = arith.constant 0 : index
    %c0_3 = arith.constant 0 : index
    %c0_4 = arith.constant 0 : index
    %1 = vector.load %arg2[%c0_2, %c0_3, %c0_4] : memref<2x4x2xf32, #tpu.memory_space<vmem>>, vector<2x4x2xf32>
    %cst = arith.constant dense<0.000000e+00> : vector<2x2xf32>
    %2 = vector.multi_reduction <add>, %0, %cst [1] : vector<2x4x2xf32> to vector<2x2xf32>
    %3 = vector.shape_cast %2 : vector<2x2xf32> to vector<2x1x2xf32>
    %cst_5 = arith.constant 4.000000e+00 : f32
    %4 = vector.broadcast %cst_5 : f32 to vector<2x1x2xf32>
    %5 = arith.divf %3, %4 : vector<2x1x2xf32>
    %6 = vector.broadcast %5 : vector<2x1x2xf32> to vector<2x4x2xf32>
    %7 = arith.subf %0, %6 : vector<2x4x2xf32>
    %8 = arith.mulf %7, %7 : vector<2x4x2xf32>
    %cst_6 = arith.constant dense<0.000000e+00> : vector<4x2xf32>
    %9 = vector.multi_reduction <add>, %8, %cst_6 [0] : vector<2x4x2xf32> to vector<4x2xf32>
    %10 = vector.shape_cast %9 : vector<4x2xf32> to vector<1x4x2xf32>
    %11 = math.sqrt %10 : vector<1x4x2xf32>
    %cst_7 = arith.constant dense<0.000000e+00> : vector<1x2xf32>
    %12 = vector.multi_reduction <add>, %11, %cst_7 [1] : vector<1x4x2xf32> to vector<1x2xf32>
    %13 = vector.shape_cast %12 : vector<1x2xf32> to vector<1x1x2xf32>
    %cst_8 = arith.constant 4.000000e+00 : f32
    %14 = vector.broadcast %cst_8 : f32 to vector<1x1x2xf32>
    %15 = arith.divf %13, %14 : vector<1x1x2xf32>
    %cst_9 = arith.constant 9.99999993E-9 : f32
    %16 = vector.broadcast %cst_9 : f32 to vector<1x1x2xf32>
    %17 = arith.addf %15, %16 : vector<1x1x2xf32>
    %cst_10 = arith.constant 1.41421354 : f32
    %18 = vector.broadcast %cst_10 : f32 to vector<1x1x2xf32>
    %19 = arith.divf %18, %17 : vector<1x1x2xf32>
    %20 = vector.broadcast %19 : vector<1x1x2xf32> to vector<2x4x2xf32>
    %21 = arith.mulf %7, %20 : vector<2x4x2xf32>
    %cst_11 = arith.constant dense<0.000000e+00> : vector<2x2xf32>
    %22 = vector.multi_reduction <add>, %1, %cst_11 [1] : vector<2x4x2xf32> to vector<2x2xf32>
    %23 = vector.shape_cast %22 : vector<2x2xf32> to vector<2x1x2xf32>
    %cst_12 = arith.constant 4.000000e+00 : f32
    %24 = vector.broadcast %cst_12 : f32 to vector<2x1x2xf32>
    %25 = arith.divf %23, %24 : vector<2x1x2xf32>
    %26 = vector.broadcast %25 : vector<2x1x2xf32> to vector<2x4x2xf32>
    %27 = arith.subf %1, %26 : vector<2x4x2xf32>
    %28 = arith.mulf %27, %27 : vector<2x4x2xf32>
    %cst_13 = arith.constant dense<0.000000e+00> : vector<4x2xf32>
    %29 = vector.multi_reduction <add>, %28, %cst_13 [0] : vector<2x4x2xf32> to vector<4x2xf32>
    %30 = vector.shape_cast %29 : vector<4x2xf32> to vector<1x4x2xf32>
    %31 = math.sqrt %30 : vector<1x4x2xf32>
    %cst_14 = arith.constant dense<0.000000e+00> : vector<1x2xf32>
    %32 = vector.multi_reduction <add>, %31, %cst_14 [1] : vector<1x4x2xf32> to vector<1x2xf32>
    %33 = vector.shape_cast %32 : vector<1x2xf32> to vector<1x1x2xf32>
    %cst_15 = arith.constant 4.000000e+00 : f32
    %34 = vector.broadcast %cst_15 : f32 to vector<1x1x2xf32>
    %35 = arith.divf %33, %34 : vector<1x1x2xf32>
    %cst_16 = arith.constant 9.99999993E-9 : f32
    %36 = vector.broadcast %cst_16 : f32 to vector<1x1x2xf32>
    %37 = arith.addf %35, %36 : vector<1x1x2xf32>
    %cst_17 = arith.constant 1.41421354 : f32
    %38 = vector.broadcast %cst_17 : f32 to vector<1x1x2xf32>
    %39 = arith.divf %38, %37 : vector<1x1x2xf32>
    %40 = vector.broadcast %39 : vector<1x1x2xf32> to vector<2x4x2xf32>
    %41 = arith.mulf %27, %40 : vector<2x4x2xf32>
    %42 = vector.extract_strided_slice %21 {offsets = [0, 0, 0], sizes = [1, 4, 2], strides = [1, 1, 1]} : vector<2x4x2xf32> to vector<1x4x2xf32>
    %43 = vector.shape_cast %42 : vector<1x4x2xf32> to vector<4x2xf32>
    %44 = vector.extract_strided_slice %21 {offsets = [1, 0, 0], sizes = [1, 4, 2], strides = [1, 1, 1]} : vector<2x4x2xf32> to vector<1x4x2xf32>
    %45 = vector.shape_cast %44 : vector<1x4x2xf32> to vector<4x2xf32>
    %46 = vector.extract_strided_slice %41 {offsets = [0, 0, 0], sizes = [1, 4, 2], strides = [1, 1, 1]} : vector<2x4x2xf32> to vector<1x4x2xf32>
    %47 = vector.shape_cast %46 : vector<1x4x2xf32> to vector<4x2xf32>
    %48 = vector.extract_strided_slice %41 {offsets = [1, 0, 0], sizes = [1, 4, 2], strides = [1, 1, 1]} : vector<2x4x2xf32> to vector<1x4x2xf32>
    %49 = vector.shape_cast %48 : vector<1x4x2xf32> to vector<4x2xf32>
    %cst_18 = arith.constant 1.000000e+00 : f32
    %50 = vector.broadcast %cst_18 : f32 to vector<4x2xf32>
    %cst_19 = arith.constant 0.000000e+00 : f32
    %51 = vector.broadcast %cst_19 : f32 to vector<4x2xf32>
    %52 = tpu.concatenate %51, %43 in 0 : vector<4x2xf32>, vector<4x2xf32> -> vector<8x2xf32>
    %53 = tpu.concatenate %51, %45 in 0 : vector<4x2xf32>, vector<4x2xf32> -> vector<8x2xf32>
    %54 = tpu.concatenate %51, %50 in 0 : vector<4x2xf32>, vector<4x2xf32> -> vector<8x2xf32>
    %cst_20 = arith.constant 0.000000e+00 : f32
    %55 = vector.broadcast %cst_20 : f32 to vector<4x2xf32>
    %56 = arith.subf %55, %43 : vector<4x2xf32>
    %57 = tpu.concatenate %56, %51 in 0 : vector<4x2xf32>, vector<4x2xf32> -> vector<8x2xf32>
    %cst_21 = arith.constant 0.000000e+00 : f32
    %58 = vector.broadcast %cst_21 : f32 to vector<4x2xf32>
    %59 = arith.subf %58, %45 : vector<4x2xf32>
    %60 = tpu.concatenate %59, %51 in 0 : vector<4x2xf32>, vector<4x2xf32> -> vector<8x2xf32>
    %cst_22 = arith.constant 0.000000e+00 : f32
    %61 = vector.broadcast %cst_22 : f32 to vector<4x2xf32>
    %62 = arith.subf %61, %50 : vector<4x2xf32>
    %63 = tpu.concatenate %62, %51 in 0 : vector<4x2xf32>, vector<4x2xf32> -> vector<8x2xf32>
    %64 = arith.mulf %49, %43 : vector<4x2xf32>
    %cst_23 = arith.constant 0.000000e+00 : f32
    %65 = vector.broadcast %cst_23 : f32 to vector<4x2xf32>
    %66 = arith.subf %65, %47 : vector<4x2xf32>
    %67 = arith.mulf %66, %43 : vector<4x2xf32>
    %68 = tpu.concatenate %64, %67 in 0 : vector<4x2xf32>, vector<4x2xf32> -> vector<8x2xf32>
    %69 = arith.mulf %49, %45 : vector<4x2xf32>
    %cst_24 = arith.constant 0.000000e+00 : f32
    %70 = vector.broadcast %cst_24 : f32 to vector<4x2xf32>
    %71 = arith.subf %70, %47 : vector<4x2xf32>
    %72 = arith.mulf %71, %45 : vector<4x2xf32>
    %73 = tpu.concatenate %69, %72 in 0 : vector<4x2xf32>, vector<4x2xf32> -> vector<8x2xf32>
    %cst_25 = arith.constant 0.000000e+00 : f32
    %74 = vector.broadcast %cst_25 : f32 to vector<4x2xf32>
    %75 = arith.subf %74, %47 : vector<4x2xf32>
    %76 = tpu.concatenate %49, %75 in 0 : vector<4x2xf32>, vector<4x2xf32> -> vector<8x2xf32>
    %77 = vector.shape_cast %52 : vector<8x2xf32> to vector<1x8x2xf32>
    %78 = vector.shape_cast %53 : vector<8x2xf32> to vector<1x8x2xf32>
    %79 = vector.shape_cast %54 : vector<8x2xf32> to vector<1x8x2xf32>
    %80 = vector.shape_cast %57 : vector<8x2xf32> to vector<1x8x2xf32>
    %81 = vector.shape_cast %60 : vector<8x2xf32> to vector<1x8x2xf32>
    %82 = vector.shape_cast %63 : vector<8x2xf32> to vector<1x8x2xf32>
    %83 = vector.shape_cast %68 : vector<8x2xf32> to vector<1x8x2xf32>
    %84 = vector.shape_cast %73 : vector<8x2xf32> to vector<1x8x2xf32>
    %85 = vector.shape_cast %76 : vector<8x2xf32> to vector<1x8x2xf32>
    %86 = tpu.concatenate %77, %78, %79, %80, %81, %82, %83, %84, %85 in 0 : vector<1x8x2xf32>, vector<1x8x2xf32>, vector<1x8x2xf32>, vector<1x8x2xf32>, vector<1x8x2xf32>, vector<1x8x2xf32>, vector<1x8x2xf32>, vector<1x8x2xf32>, vector<1x8x2xf32> -> vector<9x8x2xf32>
    %c0_26 = arith.constant 0 : index
    %c0_27 = arith.constant 0 : index
    %c0_28 = arith.constant 0 : index
    %87 = vector.load %arg3[%c0_26, %c0_27, %c0_28] : memref<9x8x2xf32, #tpu.memory_space<vmem>>, vector<9x8x2xf32>
    %cst_29 = arith.constant 9.99999974E-5 : f32
    %88 = vector.broadcast %cst_29 : f32 to vector<9x8x2xf32>
    %89 = arith.mulf %88, %87 : vector<9x8x2xf32>
    %90 = arith.addf %86, %89 : vector<9x8x2xf32>
    %91 = vector.extract_strided_slice %90 {offsets = [0, 0, 0], sizes = [1, 8, 2], strides = [1, 1, 1]} : vector<9x8x2xf32> to vector<1x8x2xf32>
    %92 = vector.shape_cast %91 : vector<1x8x2xf32> to vector<8x2xf32>
    %93 = vector.extract_strided_slice %90 {offsets = [1, 0, 0], sizes = [1, 8, 2], strides = [1, 1, 1]} : vector<9x8x2xf32> to vector<1x8x2xf32>
    %94 = vector.shape_cast %93 : vector<1x8x2xf32> to vector<8x2xf32>
    %95 = vector.extract_strided_slice %90 {offsets = [2, 0, 0], sizes = [1, 8, 2], strides = [1, 1, 1]} : vector<9x8x2xf32> to vector<1x8x2xf32>
    %96 = vector.shape_cast %95 : vector<1x8x2xf32> to vector<8x2xf32>
    %97 = vector.extract_strided_slice %90 {offsets = [3, 0, 0], sizes = [1, 8, 2], strides = [1, 1, 1]} : vector<9x8x2xf32> to vector<1x8x2xf32>
    %98 = vector.shape_cast %97 : vector<1x8x2xf32> to vector<8x2xf32>
    %99 = vector.extract_strided_slice %90 {offsets = [4, 0, 0], sizes = [1, 8, 2], strides = [1, 1, 1]} : vector<9x8x2xf32> to vector<1x8x2xf32>
    %100 = vector.shape_cast %99 : vector<1x8x2xf32> to vector<8x2xf32>
    %101 = vector.extract_strided_slice %90 {offsets = [5, 0, 0], sizes = [1, 8, 2], strides = [1, 1, 1]} : vector<9x8x2xf32> to vector<1x8x2xf32>
    %102 = vector.shape_cast %101 : vector<1x8x2xf32> to vector<8x2xf32>
    %103 = vector.extract_strided_slice %90 {offsets = [6, 0, 0], sizes = [1, 8, 2], strides = [1, 1, 1]} : vector<9x8x2xf32> to vector<1x8x2xf32>
    %104 = vector.shape_cast %103 : vector<1x8x2xf32> to vector<8x2xf32>
    %105 = vector.extract_strided_slice %90 {offsets = [7, 0, 0], sizes = [1, 8, 2], strides = [1, 1, 1]} : vector<9x8x2xf32> to vector<1x8x2xf32>
    %106 = vector.shape_cast %105 : vector<1x8x2xf32> to vector<8x2xf32>
    %107 = vector.extract_strided_slice %90 {offsets = [8, 0, 0], sizes = [1, 8, 2], strides = [1, 1, 1]} : vector<9x8x2xf32> to vector<1x8x2xf32>
    %108 = vector.shape_cast %107 : vector<1x8x2xf32> to vector<8x2xf32>
    %109 = arith.mulf %92, %92 : vector<8x2xf32>
    %cst_30 = arith.constant dense<0.000000e+00> : vector<2xf32>
    %110 = vector.multi_reduction <add>, %109, %cst_30 [0] : vector<8x2xf32> to vector<2xf32>
    %111 = vector.shape_cast %110 : vector<2xf32> to vector<1x2xf32>
    %112 = arith.mulf %92, %94 : vector<8x2xf32>
    %cst_31 = arith.constant dense<0.000000e+00> : vector<2xf32>
    %113 = vector.multi_reduction <add>, %112, %cst_31 [0] : vector<8x2xf32> to vector<2xf32>
    %114 = vector.shape_cast %113 : vector<2xf32> to vector<1x2xf32>
    %115 = arith.mulf %92, %96 : vector<8x2xf32>
    %cst_32 = arith.constant dense<0.000000e+00> : vector<2xf32>
    %116 = vector.multi_reduction <add>, %115, %cst_32 [0] : vector<8x2xf32> to vector<2xf32>
    %117 = vector.shape_cast %116 : vector<2xf32> to vector<1x2xf32>
    %118 = arith.mulf %92, %98 : vector<8x2xf32>
    %cst_33 = arith.constant dense<0.000000e+00> : vector<2xf32>
    %119 = vector.multi_reduction <add>, %118, %cst_33 [0] : vector<8x2xf32> to vector<2xf32>
    %120 = vector.shape_cast %119 : vector<2xf32> to vector<1x2xf32>
    %121 = arith.mulf %92, %100 : vector<8x2xf32>
    %cst_34 = arith.constant dense<0.000000e+00> : vector<2xf32>
    %122 = vector.multi_reduction <add>, %121, %cst_34 [0] : vector<8x2xf32> to vector<2xf32>
    %123 = vector.shape_cast %122 : vector<2xf32> to vector<1x2xf32>
    %124 = arith.mulf %92, %102 : vector<8x2xf32>
    %cst_35 = arith.constant dense<0.000000e+00> : vector<2xf32>
    %125 = vector.multi_reduction <add>, %124, %cst_35 [0] : vector<8x2xf32> to vector<2xf32>
    %126 = vector.shape_cast %125 : vector<2xf32> to vector<1x2xf32>
    %127 = arith.mulf %92, %104 : vector<8x2xf32>
    %cst_36 = arith.constant dense<0.000000e+00> : vector<2xf32>
    %128 = vector.multi_reduction <add>, %127, %cst_36 [0] : vector<8x2xf32> to vector<2xf32>
    %129 = vector.shape_cast %128 : vector<2xf32> to vector<1x2xf32>
    %130 = arith.mulf %92, %106 : vector<8x2xf32>
    %cst_37 = arith.constant dense<0.000000e+00> : vector<2xf32>
    %131 = vector.multi_reduction <add>, %130, %cst_37 [0] : vector<8x2xf32> to vector<2xf32>
    %132 = vector.shape_cast %131 : vector<2xf32> to vector<1x2xf32>
    %133 = arith.mulf %92, %108 : vector<8x2xf32>
    %cst_38 = arith.constant dense<0.000000e+00> : vector<2xf32>
    %134 = vector.multi_reduction <add>, %133, %cst_38 [0] : vector<8x2xf32> to vector<2xf32>
    %135 = vector.shape_cast %134 : vector<2xf32> to vector<1x2xf32>
    %136 = arith.mulf %94, %94 : vector<8x2xf32>
    %cst_39 = arith.constant dense<0.000000e+00> : vector<2xf32>
    %137 = vector.multi_reduction <add>, %136, %cst_39 [0] : vector<8x2xf32> to vector<2xf32>
    %138 = vector.shape_cast %137 : vector<2xf32> to vector<1x2xf32>
    %139 = arith.mulf %94, %96 : vector<8x2xf32>
    %cst_40 = arith.constant dense<0.000000e+00> : vector<2xf32>
    %140 = vector.multi_reduction <add>, %139, %cst_40 [0] : vector<8x2xf32> to vector<2xf32>
    %141 = vector.shape_cast %140 : vector<2xf32> to vector<1x2xf32>
    %142 = arith.mulf %94, %98 : vector<8x2xf32>
    %cst_41 = arith.constant dense<0.000000e+00> : vector<2xf32>
    %143 = vector.multi_reduction <add>, %142, %cst_41 [0] : vector<8x2xf32> to vector<2xf32>
    %144 = vector.shape_cast %143 : vector<2xf32> to vector<1x2xf32>
    %145 = arith.mulf %94, %100 : vector<8x2xf32>
    %cst_42 = arith.constant dense<0.000000e+00> : vector<2xf32>
    %146 = vector.multi_reduction <add>, %145, %cst_42 [0] : vector<8x2xf32> to vector<2xf32>
    %147 = vector.shape_cast %146 : vector<2xf32> to vector<1x2xf32>
    %148 = arith.mulf %94, %102 : vector<8x2xf32>
    %cst_43 = arith.constant dense<0.000000e+00> : vector<2xf32>
    %149 = vector.multi_reduction <add>, %148, %cst_43 [0] : vector<8x2xf32> to vector<2xf32>
    %150 = vector.shape_cast %149 : vector<2xf32> to vector<1x2xf32>
    %151 = arith.mulf %94, %104 : vector<8x2xf32>
    %cst_44 = arith.constant dense<0.000000e+00> : vector<2xf32>
    %152 = vector.multi_reduction <add>, %151, %cst_44 [0] : vector<8x2xf32> to vector<2xf32>
    %153 = vector.shape_cast %152 : vector<2xf32> to vector<1x2xf32>
    %154 = arith.mulf %94, %106 : vector<8x2xf32>
    %cst_45 = arith.constant dense<0.000000e+00> : vector<2xf32>
    %155 = vector.multi_reduction <add>, %154, %cst_45 [0] : vector<8x2xf32> to vector<2xf32>
    %156 = vector.shape_cast %155 : vector<2xf32> to vector<1x2xf32>
    %157 = arith.mulf %94, %108 : vector<8x2xf32>
    %cst_46 = arith.constant dense<0.000000e+00> : vector<2xf32>
    %158 = vector.multi_reduction <add>, %157, %cst_46 [0] : vector<8x2xf32> to vector<2xf32>
    %159 = vector.shape_cast %158 : vector<2xf32> to vector<1x2xf32>
    %160 = arith.mulf %96, %96 : vector<8x2xf32>
    %cst_47 = arith.constant dense<0.000000e+00> : vector<2xf32>
    %161 = vector.multi_reduction <add>, %160, %cst_47 [0] : vector<8x2xf32> to vector<2xf32>
    %162 = vector.shape_cast %161 : vector<2xf32> to vector<1x2xf32>
    %163 = arith.mulf %96, %98 : vector<8x2xf32>
    %cst_48 = arith.constant dense<0.000000e+00> : vector<2xf32>
    %164 = vector.multi_reduction <add>, %163, %cst_48 [0] : vector<8x2xf32> to vector<2xf32>
    %165 = vector.shape_cast %164 : vector<2xf32> to vector<1x2xf32>
    %166 = arith.mulf %96, %100 : vector<8x2xf32>
    %cst_49 = arith.constant dense<0.000000e+00> : vector<2xf32>
    %167 = vector.multi_reduction <add>, %166, %cst_49 [0] : vector<8x2xf32> to vector<2xf32>
    %168 = vector.shape_cast %167 : vector<2xf32> to vector<1x2xf32>
    %169 = arith.mulf %96, %102 : vector<8x2xf32>
    %cst_50 = arith.constant dense<0.000000e+00> : vector<2xf32>
    %170 = vector.multi_reduction <add>, %169, %cst_50 [0] : vector<8x2xf32> to vector<2xf32>
    %171 = vector.shape_cast %170 : vector<2xf32> to vector<1x2xf32>
    %172 = arith.mulf %96, %104 : vector<8x2xf32>
    %cst_51 = arith.constant dense<0.000000e+00> : vector<2xf32>
    %173 = vector.multi_reduction <add>, %172, %cst_51 [0] : vector<8x2xf32> to vector<2xf32>
    %174 = vector.shape_cast %173 : vector<2xf32> to vector<1x2xf32>
    %175 = arith.mulf %96, %106 : vector<8x2xf32>
    %cst_52 = arith.constant dense<0.000000e+00> : vector<2xf32>
    %176 = vector.multi_reduction <add>, %175, %cst_52 [0] : vector<8x2xf32> to vector<2xf32>
    %177 = vector.shape_cast %176 : vector<2xf32> to vector<1x2xf32>
    %178 = arith.mulf %96, %108 : vector<8x2xf32>
    %cst_53 = arith.constant dense<0.000000e+00> : vector<2xf32>
    %179 = vector.multi_reduction <add>, %178, %cst_53 [0] : vector<8x2xf32> to vector<2xf32>
    %180 = vector.shape_cast %179 : vector<2xf32> to vector<1x2xf32>
    %181 = arith.mulf %98, %98 : vector<8x2xf32>
    %cst_54 = arith.constant dense<0.000000e+00> : vector<2xf32>
    %182 = vector.multi_reduction <add>, %181, %cst_54 [0] : vector<8x2xf32> to vector<2xf32>
    %183 = vector.shape_cast %182 : vector<2xf32> to vector<1x2xf32>
    %184 = arith.mulf %98, %100 : vector<8x2xf32>
    %cst_55 = arith.constant dense<0.000000e+00> : vector<2xf32>
    %185 = vector.multi_reduction <add>, %184, %cst_55 [0] : vector<8x2xf32> to vector<2xf32>
    %186 = vector.shape_cast %185 : vector<2xf32> to vector<1x2xf32>
    %187 = arith.mulf %98, %102 : vector<8x2xf32>
    %cst_56 = arith.constant dense<0.000000e+00> : vector<2xf32>
    %188 = vector.multi_reduction <add>, %187, %cst_56 [0] : vector<8x2xf32> to vector<2xf32>
    %189 = vector.shape_cast %188 : vector<2xf32> to vector<1x2xf32>
    %190 = arith.mulf %98, %104 : vector<8x2xf32>
    %cst_57 = arith.constant dense<0.000000e+00> : vector<2xf32>
    %191 = vector.multi_reduction <add>, %190, %cst_57 [0] : vector<8x2xf32> to vector<2xf32>
    %192 = vector.shape_cast %191 : vector<2xf32> to vector<1x2xf32>
    %193 = arith.mulf %98, %106 : vector<8x2xf32>
    %cst_58 = arith.constant dense<0.000000e+00> : vector<2xf32>
    %194 = vector.multi_reduction <add>, %193, %cst_58 [0] : vector<8x2xf32> to vector<2xf32>
    %195 = vector.shape_cast %194 : vector<2xf32> to vector<1x2xf32>
    %196 = arith.mulf %98, %108 : vector<8x2xf32>
    %cst_59 = arith.constant dense<0.000000e+00> : vector<2xf32>
    %197 = vector.multi_reduction <add>, %196, %cst_59 [0] : vector<8x2xf32> to vector<2xf32>
    %198 = vector.shape_cast %197 : vector<2xf32> to vector<1x2xf32>
    %199 = arith.mulf %100, %100 : vector<8x2xf32>
    %cst_60 = arith.constant dense<0.000000e+00> : vector<2xf32>
    %200 = vector.multi_reduction <add>, %199, %cst_60 [0] : vector<8x2xf32> to vector<2xf32>
    %201 = vector.shape_cast %200 : vector<2xf32> to vector<1x2xf32>
    %202 = arith.mulf %100, %102 : vector<8x2xf32>
    %cst_61 = arith.constant dense<0.000000e+00> : vector<2xf32>
    %203 = vector.multi_reduction <add>, %202, %cst_61 [0] : vector<8x2xf32> to vector<2xf32>
    %204 = vector.shape_cast %203 : vector<2xf32> to vector<1x2xf32>
    %205 = arith.mulf %100, %104 : vector<8x2xf32>
    %cst_62 = arith.constant dense<0.000000e+00> : vector<2xf32>
    %206 = vector.multi_reduction <add>, %205, %cst_62 [0] : vector<8x2xf32> to vector<2xf32>
    %207 = vector.shape_cast %206 : vector<2xf32> to vector<1x2xf32>
    %208 = arith.mulf %100, %106 : vector<8x2xf32>
    %cst_63 = arith.constant dense<0.000000e+00> : vector<2xf32>
    %209 = vector.multi_reduction <add>, %208, %cst_63 [0] : vector<8x2xf32> to vector<2xf32>
    %210 = vector.shape_cast %209 : vector<2xf32> to vector<1x2xf32>
    %211 = arith.mulf %100, %108 : vector<8x2xf32>
    %cst_64 = arith.constant dense<0.000000e+00> : vector<2xf32>
    %212 = vector.multi_reduction <add>, %211, %cst_64 [0] : vector<8x2xf32> to vector<2xf32>
    %213 = vector.shape_cast %212 : vector<2xf32> to vector<1x2xf32>
    %214 = arith.mulf %102, %102 : vector<8x2xf32>
    %cst_65 = arith.constant dense<0.000000e+00> : vector<2xf32>
    %215 = vector.multi_reduction <add>, %214, %cst_65 [0] : vector<8x2xf32> to vector<2xf32>
    %216 = vector.shape_cast %215 : vector<2xf32> to vector<1x2xf32>
    %217 = arith.mulf %102, %104 : vector<8x2xf32>
    %cst_66 = arith.constant dense<0.000000e+00> : vector<2xf32>
    %218 = vector.multi_reduction <add>, %217, %cst_66 [0] : vector<8x2xf32> to vector<2xf32>
    %219 = vector.shape_cast %218 : vector<2xf32> to vector<1x2xf32>
    %220 = arith.mulf %102, %106 : vector<8x2xf32>
    %cst_67 = arith.constant dense<0.000000e+00> : vector<2xf32>
    %221 = vector.multi_reduction <add>, %220, %cst_67 [0] : vector<8x2xf32> to vector<2xf32>
    %222 = vector.shape_cast %221 : vector<2xf32> to vector<1x2xf32>
    %223 = arith.mulf %102, %108 : vector<8x2xf32>
    %cst_68 = arith.constant dense<0.000000e+00> : vector<2xf32>
    %224 = vector.multi_reduction <add>, %223, %cst_68 [0] : vector<8x2xf32> to vector<2xf32>
    %225 = vector.shape_cast %224 : vector<2xf32> to vector<1x2xf32>
    %226 = arith.mulf %104, %104 : vector<8x2xf32>
    %cst_69 = arith.constant dense<0.000000e+00> : vector<2xf32>
    %227 = vector.multi_reduction <add>, %226, %cst_69 [0] : vector<8x2xf32> to vector<2xf32>
    %228 = vector.shape_cast %227 : vector<2xf32> to vector<1x2xf32>
    %229 = arith.mulf %104, %106 : vector<8x2xf32>
    %cst_70 = arith.constant dense<0.000000e+00> : vector<2xf32>
    %230 = vector.multi_reduction <add>, %229, %cst_70 [0] : vector<8x2xf32> to vector<2xf32>
    %231 = vector.shape_cast %230 : vector<2xf32> to vector<1x2xf32>
    %232 = arith.mulf %104, %108 : vector<8x2xf32>
    %cst_71 = arith.constant dense<0.000000e+00> : vector<2xf32>
    %233 = vector.multi_reduction <add>, %232, %cst_71 [0] : vector<8x2xf32> to vector<2xf32>
    %234 = vector.shape_cast %233 : vector<2xf32> to vector<1x2xf32>
    %235 = arith.mulf %106, %106 : vector<8x2xf32>
    %cst_72 = arith.constant dense<0.000000e+00> : vector<2xf32>
    %236 = vector.multi_reduction <add>, %235, %cst_72 [0] : vector<8x2xf32> to vector<2xf32>
    %237 = vector.shape_cast %236 : vector<2xf32> to vector<1x2xf32>
    %238 = arith.mulf %106, %108 : vector<8x2xf32>
    %cst_73 = arith.constant dense<0.000000e+00> : vector<2xf32>
    %239 = vector.multi_reduction <add>, %238, %cst_73 [0] : vector<8x2xf32> to vector<2xf32>
    %240 = vector.shape_cast %239 : vector<2xf32> to vector<1x2xf32>
    %241 = arith.mulf %108, %108 : vector<8x2xf32>
    %cst_74 = arith.constant dense<0.000000e+00> : vector<2xf32>
    %242 = vector.multi_reduction <add>, %241, %cst_74 [0] : vector<8x2xf32> to vector<2xf32>
    %243 = vector.shape_cast %242 : vector<2xf32> to vector<1x2xf32>
    %244 = tpu.concatenate %111, %114, %117, %120, %123, %126, %129, %132, %135 in 0 : vector<1x2xf32>, vector<1x2xf32>, vector<1x2xf32>, vector<1x2xf32>, vector<1x2xf32>, vector<1x2xf32>, vector<1x2xf32>, vector<1x2xf32>, vector<1x2xf32> -> vector<9x2xf32>
    %245 = tpu.concatenate %114, %138, %141, %144, %147, %150, %153, %156, %159 in 0 : vector<1x2xf32>, vector<1x2xf32>, vector<1x2xf32>, vector<1x2xf32>, vector<1x2xf32>, vector<1x2xf32>, vector<1x2xf32>, vector<1x2xf32>, vector<1x2xf32> -> vector<9x2xf32>
    %246 = tpu.concatenate %117, %141, %162, %165, %168, %171, %174, %177, %180 in 0 : vector<1x2xf32>, vector<1x2xf32>, vector<1x2xf32>, vector<1x2xf32>, vector<1x2xf32>, vector<1x2xf32>, vector<1x2xf32>, vector<1x2xf32>, vector<1x2xf32> -> vector<9x2xf32>
    %247 = tpu.concatenate %120, %144, %165, %183, %186, %189, %192, %195, %198 in 0 : vector<1x2xf32>, vector<1x2xf32>, vector<1x2xf32>, vector<1x2xf32>, vector<1x2xf32>, vector<1x2xf32>, vector<1x2xf32>, vector<1x2xf32>, vector<1x2xf32> -> vector<9x2xf32>
    %248 = tpu.concatenate %123, %147, %168, %186, %201, %204, %207, %210, %213 in 0 : vector<1x2xf32>, vector<1x2xf32>, vector<1x2xf32>, vector<1x2xf32>, vector<1x2xf32>, vector<1x2xf32>, vector<1x2xf32>, vector<1x2xf32>, vector<1x2xf32> -> vector<9x2xf32>
    %249 = tpu.concatenate %126, %150, %171, %189, %204, %216, %219, %222, %225 in 0 : vector<1x2xf32>, vector<1x2xf32>, vector<1x2xf32>, vector<1x2xf32>, vector<1x2xf32>, vector<1x2xf32>, vector<1x2xf32>, vector<1x2xf32>, vector<1x2xf32> -> vector<9x2xf32>
    %250 = tpu.concatenate %129, %153, %174, %192, %207, %219, %228, %231, %234 in 0 : vector<1x2xf32>, vector<1x2xf32>, vector<1x2xf32>, vector<1x2xf32>, vector<1x2xf32>, vector<1x2xf32>, vector<1x2xf32>, vector<1x2xf32>, vector<1x2xf32> -> vector<9x2xf32>
    %251 = tpu.concatenate %132, %156, %177, %195, %210, %222, %231, %237, %240 in 0 : vector<1x2xf32>, vector<1x2xf32>, vector<1x2xf32>, vector<1x2xf32>, vector<1x2xf32>, vector<1x2xf32>, vector<1x2xf32>, vector<1x2xf32>, vector<1x2xf32> -> vector<9x2xf32>
    %252 = tpu.concatenate %135, %159, %180, %198, %213, %225, %234, %240, %243 in 0 : vector<1x2xf32>, vector<1x2xf32>, vector<1x2xf32>, vector<1x2xf32>, vector<1x2xf32>, vector<1x2xf32>, vector<1x2xf32>, vector<1x2xf32>, vector<1x2xf32> -> vector<9x2xf32>
    %253 = vector.shape_cast %244 : vector<9x2xf32> to vector<1x9x2xf32>
    %254 = vector.shape_cast %245 : vector<9x2xf32> to vector<1x9x2xf32>
    %255 = vector.shape_cast %246 : vector<9x2xf32> to vector<1x9x2xf32>
    %256 = vector.shape_cast %247 : vector<9x2xf32> to vector<1x9x2xf32>
    %257 = vector.shape_cast %248 : vector<9x2xf32> to vector<1x9x2xf32>
    %258 = vector.shape_cast %249 : vector<9x2xf32> to vector<1x9x2xf32>
    %259 = vector.shape_cast %250 : vector<9x2xf32> to vector<1x9x2xf32>
    %260 = vector.shape_cast %251 : vector<9x2xf32> to vector<1x9x2xf32>
    %261 = vector.shape_cast %252 : vector<9x2xf32> to vector<1x9x2xf32>
    %262 = tpu.concatenate %253, %254, %255, %256, %257, %258, %259, %260, %261 in 0 : vector<1x9x2xf32>, vector<1x9x2xf32>, vector<1x9x2xf32>, vector<1x9x2xf32>, vector<1x9x2xf32>, vector<1x9x2xf32>, vector<1x9x2xf32>, vector<1x9x2xf32>, vector<1x9x2xf32> -> vector<9x9x2xf32>
    %c0_75 = arith.constant 0 : index
    %c0_76 = arith.constant 0 : index
    %c0_77 = arith.constant 0 : index
    %263 = vector.load %arg4[%c0_75, %c0_76, %c0_77] : memref<9x9x2xf32, #tpu.memory_space<vmem>>, vector<9x9x2xf32>
    tpu.vector_store %arg4[%c0_75, %c0_76, %c0_77], %262 {strides = array<i32>} : memref<9x9x2xf32, #tpu.memory_space<vmem>>, vector<9x9x2xf32>,
    return
  }
  func.func @transform_0(%arg0: i32) -> (i32, i32, i32) {
    %c0_i32 = arith.constant 0 : i32
    %c0_i32_0 = arith.constant 0 : i32
    %c0_i32_1 = arith.constant 0 : i32
    %c0_i32_2 = arith.constant 0 : i32
    return %c0_i32, %c0_i32_0, %c0_i32_1 : i32, i32, i32
  }
  func.func @transform_1(%arg0: i32) -> (i32, i32, i32) {
    %c0_i32 = arith.constant 0 : i32
    %c0_i32_0 = arith.constant 0 : i32
    %c0_i32_1 = arith.constant 0 : i32
    %c0_i32_2 = arith.constant 0 : i32
    return %c0_i32, %c0_i32_0, %c0_i32_1 : i32, i32, i32
  }
  func.func @transform_2(%arg0: i32) -> (i32, i32, i32) {
    %c0_i32 = arith.constant 0 : i32
    %c0_i32_0 = arith.constant 0 : i32
    %c0_i32_1 = arith.constant 0 : i32
    %c0_i32_2 = arith.constant 0 : i32
    return %c0_i32, %c0_i32_0, %c0_i32_1 : i32, i32, i32
  }
  func.func @transform_3(%arg0: i32) -> (i32, i32, i32) {
    %c0_i32 = arith.constant 0 : i32
    %c0_i32_0 = arith.constant 0 : i32
    %c0_i32_1 = arith.constant 0 : i32
    %c0_i32_2 = arith.constant 0 : i32
    return %c0_i32, %c0_i32_0, %c0_i32_1 : i32, i32, i32
  }
}

</mosaic_0001>

<llo_original>
// kernel: custom-call.2
$region0: #{custom-call.2}
  %s0 = inlined_call_operand.vmem [shape: f32[2,5,5], index: 0, kind: input, shape index: {}]
  %s1 = inlined_call_operand.vmem [shape: f32[2,5,5], index: 1, kind: input, shape index: {}]
  %s2 = inlined_call_operand.vmem [shape: f32[2,5,5], index: 2, kind: input, shape index: {}]
  %s3 = inlined_call_operand.vmem [shape: f32[2,5,5], index: 3, kind: input, shape index: {}]
  %s4 = inlined_call_operand.vmem [shape: f32[2,5], index: 4, kind: output, shape index: {0}]
  %s5 = inlined_call_operand.vmem [shape: f32[2,5], index: 5, kind: output, shape index: {1}]
  %s6 = inlined_call_operand.vmem [shape: f32[2,5,5], index: 6, kind: output, shape index: {2}]
  %s7 = inlined_call_operand.vmem [shape: f32[2,5,5], index: 7, kind: output, shape index: {3}]
  %s8 = inlined_call_operand.vmem [shape: f32[2,5,5], index: 8, kind: output, shape index: {4}]
  %s9 = inlined_call_operand.vmem [shape: f32[2,5,5], index: 9, kind: output, shape index: {5}]
  %10 = xla_tuple %s4, %s5, %s6, %s7, %s8, %s9
  $region1: #{custom-call.2} parent=0
    #allocation0 [shape = 'u8[8192]{0}', space=vmem, size = 0x2000, scoped, tag = 'operand span for operand 0']
    #allocation1 [shape = 'u8[8192]{0}', space=vmem, size = 0x2000, scoped, tag = 'operand span for operand 1']
    #allocation2 [shape = 'u8[8192]{0}', space=vmem, size = 0x2000, scoped, tag = 'operand span for operand 2']
    #allocation3 [shape = 'u8[8192]{0}', space=vmem, size = 0x2000, scoped, tag = 'operand span for operand 3']
    #allocation4 [shape = 'u8[4096]{0}', space=vmem, size = 0x1000, scoped, tag = 'operand span for operand 4']
    #allocation5 [shape = 'u8[2048]{0}', space=vmem, size = 0x800, scoped, tag = 'packed  for operand 4']
    #allocation6 [shape = 'u8[4096]{0}', space=vmem, size = 0x1000, scoped, tag = 'operand span for operand 5']
    #allocation7 [shape = 'u8[2048]{0}', space=vmem, size = 0x800, scoped, tag = 'packed  for operand 5']
    #allocation8 [shape = 'u8[8192]{0}', space=vmem, size = 0x2000, scoped, tag = 'operand span for operand 6']
    #allocation9 [shape = 'u8[8192]{0}', space=vmem, size = 0x2000, scoped, tag = 'operand span for operand 7']
    #allocation10 [shape = 'u8[8192]{0}', space=vmem, size = 0x2000, scoped, tag = 'operand span for operand 8']
    #allocation11 [shape = 'u8[8192]{0}', space=vmem, size = 0x2000, scoped, tag = 'operand span for operand 9']
    loop: start=0, step=1, limit=4
    $region2: #{custom-call.2} parent=1 // loop_pre_header
      _
    $region3: #{custom-call.2} parent=1 // loop_header
      %s12 = sphi 0, %s16
      %p13 = scmp.ge.s32.totalorder %s12, 4
      %s24 = sphi 0, %s26
      %s27 = sphi 0, %s24
      %s28 = sphi 0, %s27
      %s44 = sphi 0, %s28
      %s52 = sphi 0, %s54
      %s55 = sphi 0, %s52
      %s56 = sphi 0, %s55
      %s72 = sphi 0, %s56
    $region4: #{custom-call.2} parent=1 // loop_header_branch
      %15 = sbr.rel (%p13) target = $region8
    $region5: #{custom-call.2} parent=1 // loop_body
      %s17 = ssub.s32 %s12, 1
      %s18 = ssub.s32 %s12, 2
      %s19 = sadd.s32 %s12, 1
      %s20 = sshrl.u32 %s12, 3
      %s21 = sshrl.u32 %s19, 3
      %s22 = ssub.s32 %s20, %s21
      %p23 = scmp.eq.s32.totalorder %s22, 0
      %s25 = sadd.s32 %s24, 1
      %s26 = scalar_select %p23, %s24, %s25
      %p29 = pneg %p23
      %p30 = scmp.eq.s32.totalorder %s12, 1
      %p31 = por %p29, %p30
      %p32 = scmp.ne.s32.totalorder %s24, %s27
      %p33 = scmp.eq.s32.totalorder %s12, 0
      %p34 = por %p32, %p33
      %p35 = scmp.ne.s32.totalorder %s24, %s27
      %p36 = scmp.eq.s32.totalorder %s17, 1
      %p37 = por %p35, %p36
      %p38 = scmp.ne.s32.totalorder %s27, %s28
      %p39 = scmp.eq.s32.totalorder %s17, 0
      %p40 = por %p38, %p39
      %p41 = scmp.ne.s32.totalorder %s27, %s28
      %p42 = scmp.eq.s32.totalorder %s18, 1
      %p43 = por %p41, %p42
      %p45 = scmp.ne.s32.totalorder %s28, %s44
      %p46 = scmp.eq.s32.totalorder %s18, 0
      %p47 = por %p45, %p46
      %s48 = sshrl.u32 %s12, 3
      %s49 = sshrl.u32 %s19, 3
      %s50 = ssub.s32 %s48, %s49
      %p51 = scmp.eq.s32.totalorder %s50, 0
      %s53 = sadd.s32 %s52, 1
      %s54 = scalar_select %p51, %s52, %s53
      %p57 = pneg %p51
      %p58 = scmp.eq.s32.totalorder %s12, 1
      %p59 = por %p57, %p58
      %p60 = scmp.ne.s32.totalorder %s52, %s55
      %p61 = scmp.eq.s32.totalorder %s12, 0
      %p62 = por %p60, %p61
      %p63 = scmp.ne.s32.totalorder %s52, %s55
      %p64 = scmp.eq.s32.totalorder %s17, 1
      %p65 = por %p63, %p64
      %p66 = scmp.ne.s32.totalorder %s55, %s56
      %p67 = scmp.eq.s32.totalorder %s17, 0
      %p68 = por %p66, %p67
      %p69 = scmp.ne.s32.totalorder %s55, %s56
      %p70 = scmp.eq.s32.totalorder %s18, 1
      %p71 = por %p69, %p70
      %p73 = scmp.ne.s32.totalorder %s56, %s72
      %p74 = scmp.eq.s32.totalorder %s18, 0
      %p75 = por %p73, %p74
      %p76 = scmp.le.s32.totalorder 1, %s12
      %p77 = scmp.lt.s32.totalorder %s12, 3
      %p78 = pnand %p76, %p77
      %p79 = pneg %p78
      // Predicated region
      $region9: #{custom-call.2} parent=5 // pred_check
        _
      $region10: #{custom-call.2} parent=5 // pred_check_branch
        %81 = sbr.rel (%p78) target = $region12
      $region11: #{custom-call.2} parent=5 // pred_region
        %s82 = ssub.s32 %s12, 1
      $region12: #{custom-call.2} parent=5 // pred_fallthru
        _
      %p83 = scmp.lt.s32.totalorder %s12, 2
      // Predicated region
      $region13: #{custom-call.2} parent=5 // pred_check
        %p84 = pneg %p83
      $region14: #{custom-call.2} parent=5 // pred_check_branch
        %86 = sbr.rel (%p84) target = $region16
      $region15: #{custom-call.2} parent=5 // pred_region
        %s87 = sand.u32 %s12, 1
        %s88 = sand.u32 %s12, 1
        %s89 = smul.addr %s88, 8
        %s90 = scalar_lea.vmem [#allocation0], %s89
        %s91 = smul.addr %s12, 8
        %s92 = scalar_lea.vmem %s0, %s91
        // Predicated region
        $region17: #{custom-call.2} parent=15 // pred_check
          _
        $region18: #{custom-call.2} parent=15 // pred_check_branch
          %94 = sbr.rel (0) target = $region20
        $region19: #{custom-call.2} parent=15 // pred_region
          // Predicated region
          $region21: #{custom-call.2} parent=19 // pred_check
            _
          $region22: #{custom-call.2} parent=19 // pred_check_branch
            %96 = sbr.rel (0) target = $region24
          $region23: #{custom-call.2} parent=19 // pred_region
            // Predicated region
            $region36: #{custom-call.2} parent=23 // pred_check
              _
            $region37: #{custom-call.2} parent=23 // pred_check_branch
              %112 = sbr.rel (0) target = $region39
            $region38: #{custom-call.2} parent=23 // pred_region
              loop: start=0, step=1, limit=1
              $region40: #{custom-call.2} parent=38 // loop_pre_header
                _
              $region41: #{custom-call.2} parent=38 // loop_header
                %s114 = sphi 0, %s118
                %p115 = scmp.ge.s32.totalorder %s114, 1
                %s119 = sphi %s92, %s92
                %s120 = sphi %s90, %s90
              $region42: #{custom-call.2} parent=38 // loop_header_branch
                %117 = sbr.rel (%p115) target = $region46
              $region43: #{custom-call.2} parent=38 // loop_body
                %v121 = vld [vmem:[%s119] sm:$0xff]
                %122 = vst [vmem:[%s120] sm:$0xff] %v121
              $region44: #{custom-call.2} parent=38 // loop_footer
                %s118 = sadd.s32 1, %s114
              $region45: #{custom-call.2} parent=38 // loop_footer_branch
                %113 = sbr.rel target = $region41
              $region46: #{custom-call.2} parent=38 // loop_exit
                _
            $region39: #{custom-call.2} parent=23 // pred_fallthru
              _
            // Predicated region
            $region47: #{custom-call.2} parent=23 // pred_check
              _
            $region48: #{custom-call.2} parent=23 // pred_check_branch
              %124 = sbr.rel target = $region50
            $region49: #{custom-call.2} parent=23 // pred_region
              _
            $region50: #{custom-call.2} parent=23 // pred_fallthru
              _
          $region24: #{custom-call.2} parent=19 // pred_fallthru
            _
          // Predicated region
          $region25: #{custom-call.2} parent=19 // pred_check
            _
          $region26: #{custom-call.2} parent=19 // pred_check_branch
            %98 = sbr.rel target = $region28
          $region27: #{custom-call.2} parent=19 // pred_region
            %s100 = ssub.s32 256, 1
            loop: start=0, step=1, limit=1
            $region29: #{custom-call.2} parent=27 // loop_pre_header
              _
            $region30: #{custom-call.2} parent=27 // loop_header
              %s102 = sphi 0, %s106
              %p103 = scmp.ge.s32.totalorder %s102, 1
              %s107 = sphi %s92, %s92
              %s108 = sphi %s90, %s90
            $region31: #{custom-call.2} parent=27 // loop_header_branch
              %105 = sbr.rel (%p103) target = $region35
            $region32: #{custom-call.2} parent=27 // loop_body
              %v109 = vld [vmem:[%s107] sm:%s100]
              %110 = vst [vmem:[%s108] sm:%s100] %v109
            $region33: #{custom-call.2} parent=27 // loop_footer
              %s106 = sadd.s32 1, %s102
            $region34: #{custom-call.2} parent=27 // loop_footer_branch
              %101 = sbr.rel target = $region30
            $region35: #{custom-call.2} parent=27 // loop_exit
              _
          $region28: #{custom-call.2} parent=19 // pred_fallthru
            _
        $region20: #{custom-call.2} parent=15 // pred_fallthru
          _
        %125 = vnop
        %s126 = sand.u32 %s12, 1
        %s127 = sand.u32 %s12, 1
        %s128 = smul.addr %s127, 8
        %s129 = scalar_lea.vmem [#allocation1], %s128
        %s130 = smul.addr %s12, 8
        %s131 = scalar_lea.vmem %s1, %s130
        // Predicated region
        $region51: #{custom-call.2} parent=15 // pred_check
          _
        $region52: #{custom-call.2} parent=15 // pred_check_branch
          %133 = sbr.rel (0) target = $region54
        $region53: #{custom-call.2} parent=15 // pred_region
          // Predicated region
          $region55: #{custom-call.2} parent=53 // pred_check
            _
          $region56: #{custom-call.2} parent=53 // pred_check_branch
            %135 = sbr.rel (0) target = $region58
          $region57: #{custom-call.2} parent=53 // pred_region
            // Predicated region
            $region70: #{custom-call.2} parent=57 // pred_check
              _
            $region71: #{custom-call.2} parent=57 // pred_check_branch
              %151 = sbr.rel (0) target = $region73
            $region72: #{custom-call.2} parent=57 // pred_region
              loop: start=0, step=1, limit=1
              $region74: #{custom-call.2} parent=72 // loop_pre_header
                _
              $region75: #{custom-call.2} parent=72 // loop_header
                %s153 = sphi 0, %s157
                %p154 = scmp.ge.s32.totalorder %s153, 1
                %s158 = sphi %s131, %s131
                %s159 = sphi %s129, %s129
              $region76: #{custom-call.2} parent=72 // loop_header_branch
                %156 = sbr.rel (%p154) target = $region80
              $region77: #{custom-call.2} parent=72 // loop_body
                %v160 = vld [vmem:[%s158] sm:$0xff]
                %161 = vst [vmem:[%s159] sm:$0xff] %v160
              $region78: #{custom-call.2} parent=72 // loop_footer
                %s157 = sadd.s32 1, %s153
              $region79: #{custom-call.2} parent=72 // loop_footer_branch
                %152 = sbr.rel target = $region75
              $region80: #{custom-call.2} parent=72 // loop_exit
                _
            $region73: #{custom-call.2} parent=57 // pred_fallthru
              _
            // Predicated region
            $region81: #{custom-call.2} parent=57 // pred_check
              _
            $region82: #{custom-call.2} parent=57 // pred_check_branch
              %163 = sbr.rel target = $region84
            $region83: #{custom-call.2} parent=57 // pred_region
              _
            $region84: #{custom-call.2} parent=57 // pred_fallthru
              _
          $region58: #{custom-call.2} parent=53 // pred_fallthru
            _
          // Predicated region
          $region59: #{custom-call.2} parent=53 // pred_check
            _
          $region60: #{custom-call.2} parent=53 // pred_check_branch
            %137 = sbr.rel target = $region62
          $region61: #{custom-call.2} parent=53 // pred_region
            %s139 = ssub.s32 256, 1
            loop: start=0, step=1, limit=1
            $region63: #{custom-call.2} parent=61 // loop_pre_header
              _
            $region64: #{custom-call.2} parent=61 // loop_header
              %s141 = sphi 0, %s145
              %p142 = scmp.ge.s32.totalorder %s141, 1
              %s146 = sphi %s131, %s131
              %s147 = sphi %s129, %s129
            $region65: #{custom-call.2} parent=61 // loop_header_branch
              %144 = sbr.rel (%p142) target = $region69
            $region66: #{custom-call.2} parent=61 // loop_body
              %v148 = vld [vmem:[%s146] sm:%s139]
              %149 = vst [vmem:[%s147] sm:%s139] %v148
            $region67: #{custom-call.2} parent=61 // loop_footer
              %s145 = sadd.s32 1, %s141
            $region68: #{custom-call.2} parent=61 // loop_footer_branch
              %140 = sbr.rel target = $region64
            $region69: #{custom-call.2} parent=61 // loop_exit
              _
          $region62: #{custom-call.2} parent=53 // pred_fallthru
            _
        $region54: #{custom-call.2} parent=15 // pred_fallthru
          _
        %164 = vnop
        %s165 = sand.u32 %s12, 1
        %s166 = sand.u32 %s12, 1
        %s167 = smul.addr %s166, 8
        %s168 = scalar_lea.vmem [#allocation2], %s167
        %s169 = smul.addr %s12, 8
        %s170 = scalar_lea.vmem %s2, %s169
        // Predicated region
        $region85: #{custom-call.2} parent=15 // pred_check
          _
        $region86: #{custom-call.2} parent=15 // pred_check_branch
          %172 = sbr.rel (0) target = $region88
        $region87: #{custom-call.2} parent=15 // pred_region
          // Predicated region
          $region89: #{custom-call.2} parent=87 // pred_check
            _
          $region90: #{custom-call.2} parent=87 // pred_check_branch
            %174 = sbr.rel (0) target = $region92
          $region91: #{custom-call.2} parent=87 // pred_region
            // Predicated region
            $region104: #{custom-call.2} parent=91 // pred_check
              _
            $region105: #{custom-call.2} parent=91 // pred_check_branch
              %190 = sbr.rel (0) target = $region107
            $region106: #{custom-call.2} parent=91 // pred_region
              loop: start=0, step=1, limit=1
              $region108: #{custom-call.2} parent=106 // loop_pre_header
                _
              $region109: #{custom-call.2} parent=106 // loop_header
                %s192 = sphi 0, %s196
                %p193 = scmp.ge.s32.totalorder %s192, 1
                %s197 = sphi %s170, %s170
                %s198 = sphi %s168, %s168
              $region110: #{custom-call.2} parent=106 // loop_header_branch
                %195 = sbr.rel (%p193) target = $region114
              $region111: #{custom-call.2} parent=106 // loop_body
                %v199 = vld [vmem:[%s197] sm:$0xff]
                %200 = vst [vmem:[%s198] sm:$0xff] %v199
              $region112: #{custom-call.2} parent=106 // loop_footer
                %s196 = sadd.s32 1, %s192
              $region113: #{custom-call.2} parent=106 // loop_footer_branch
                %191 = sbr.rel target = $region109
              $region114: #{custom-call.2} parent=106 // loop_exit
                _
            $region107: #{custom-call.2} parent=91 // pred_fallthru
              _
            // Predicated region
            $region115: #{custom-call.2} parent=91 // pred_check
              _
            $region116: #{custom-call.2} parent=91 // pred_check_branch
              %202 = sbr.rel target = $region118
            $region117: #{custom-call.2} parent=91 // pred_region
              _
            $region118: #{custom-call.2} parent=91 // pred_fallthru
              _
          $region92: #{custom-call.2} parent=87 // pred_fallthru
            _
          // Predicated region
          $region93: #{custom-call.2} parent=87 // pred_check
            _
          $region94: #{custom-call.2} parent=87 // pred_check_branch
            %176 = sbr.rel target = $region96
          $region95: #{custom-call.2} parent=87 // pred_region
            %s178 = ssub.s32 256, 1
            loop: start=0, step=1, limit=1
            $region97: #{custom-call.2} parent=95 // loop_pre_header
              _
            $region98: #{custom-call.2} parent=95 // loop_header
              %s180 = sphi 0, %s184
              %p181 = scmp.ge.s32.totalorder %s180, 1
              %s185 = sphi %s170, %s170
              %s186 = sphi %s168, %s168
            $region99: #{custom-call.2} parent=95 // loop_header_branch
              %183 = sbr.rel (%p181) target = $region103
            $region100: #{custom-call.2} parent=95 // loop_body
              %v187 = vld [vmem:[%s185] sm:%s178]
              %188 = vst [vmem:[%s186] sm:%s178] %v187
            $region101: #{custom-call.2} parent=95 // loop_footer
              %s184 = sadd.s32 1, %s180
            $region102: #{custom-call.2} parent=95 // loop_footer_branch
              %179 = sbr.rel target = $region98
            $region103: #{custom-call.2} parent=95 // loop_exit
              _
          $region96: #{custom-call.2} parent=87 // pred_fallthru
            _
        $region88: #{custom-call.2} parent=15 // pred_fallthru
          _
        %203 = vnop
        %s204 = sand.u32 %s12, 1
        %s205 = sand.u32 %s12, 1
        %s206 = smul.addr %s205, 8
        %s207 = scalar_lea.vmem [#allocation3], %s206
        %s208 = smul.addr %s12, 8
        %s209 = scalar_lea.vmem %s3, %s208
        // Predicated region
        $region119: #{custom-call.2} parent=15 // pred_check
          _
        $region120: #{custom-call.2} parent=15 // pred_check_branch
          %211 = sbr.rel (0) target = $region122
        $region121: #{custom-call.2} parent=15 // pred_region
          // Predicated region
          $region123: #{custom-call.2} parent=121 // pred_check
            _
          $region124: #{custom-call.2} parent=121 // pred_check_branch
            %213 = sbr.rel (0) target = $region126
          $region125: #{custom-call.2} parent=121 // pred_region
            // Predicated region
            $region138: #{custom-call.2} parent=125 // pred_check
              _
            $region139: #{custom-call.2} parent=125 // pred_check_branch
              %229 = sbr.rel (0) target = $region141
            $region140: #{custom-call.2} parent=125 // pred_region
              loop: start=0, step=1, limit=1
              $region142: #{custom-call.2} parent=140 // loop_pre_header
                _
              $region143: #{custom-call.2} parent=140 // loop_header
                %s231 = sphi 0, %s235
                %p232 = scmp.ge.s32.totalorder %s231, 1
                %s236 = sphi %s209, %s209
                %s237 = sphi %s207, %s207
              $region144: #{custom-call.2} parent=140 // loop_header_branch
                %234 = sbr.rel (%p232) target = $region148
              $region145: #{custom-call.2} parent=140 // loop_body
                %v238 = vld [vmem:[%s236] sm:$0xff]
                %239 = vst [vmem:[%s237] sm:$0xff] %v238
              $region146: #{custom-call.2} parent=140 // loop_footer
                %s235 = sadd.s32 1, %s231
              $region147: #{custom-call.2} parent=140 // loop_footer_branch
                %230 = sbr.rel target = $region143
              $region148: #{custom-call.2} parent=140 // loop_exit
                _
            $region141: #{custom-call.2} parent=125 // pred_fallthru
              _
            // Predicated region
            $region149: #{custom-call.2} parent=125 // pred_check
              _
            $region150: #{custom-call.2} parent=125 // pred_check_branch
              %241 = sbr.rel target = $region152
            $region151: #{custom-call.2} parent=125 // pred_region
              _
            $region152: #{custom-call.2} parent=125 // pred_fallthru
              _
          $region126: #{custom-call.2} parent=121 // pred_fallthru
            _
          // Predicated region
          $region127: #{custom-call.2} parent=121 // pred_check
            _
          $region128: #{custom-call.2} parent=121 // pred_check_branch
            %215 = sbr.rel target = $region130
          $region129: #{custom-call.2} parent=121 // pred_region
            %s217 = ssub.s32 256, 1
            loop: start=0, step=1, limit=1
            $region131: #{custom-call.2} parent=129 // loop_pre_header
              _
            $region132: #{custom-call.2} parent=129 // loop_header
              %s219 = sphi 0, %s223
              %p220 = scmp.ge.s32.totalorder %s219, 1
              %s224 = sphi %s209, %s209
              %s225 = sphi %s207, %s207
            $region133: #{custom-call.2} parent=129 // loop_header_branch
              %222 = sbr.rel (%p220) target = $region137
            $region134: #{custom-call.2} parent=129 // loop_body
              %v226 = vld [vmem:[%s224] sm:%s217]
              %227 = vst [vmem:[%s225] sm:%s217] %v226
            $region135: #{custom-call.2} parent=129 // loop_footer
              %s223 = sadd.s32 1, %s219
            $region136: #{custom-call.2} parent=129 // loop_footer_branch
              %218 = sbr.rel target = $region132
            $region137: #{custom-call.2} parent=129 // loop_exit
              _
          $region130: #{custom-call.2} parent=121 // pred_fallthru
            _
        $region122: #{custom-call.2} parent=15 // pred_fallthru
          _
        %242 = vnop
      $region16: #{custom-call.2} parent=5 // pred_fallthru
        _
      %p243 = scmp.le.s32.totalorder 1, %s12
      %p244 = scmp.lt.s32.totalorder %s12, 3
      %p245 = pnand %p243, %p244
      %p246 = pneg %p245
      // Predicated region
      $region153: #{custom-call.2} parent=5 // pred_check
        _
      $region154: #{custom-call.2} parent=5 // pred_check_branch
        %248 = sbr.rel (%p245) target = $region156
      $region155: #{custom-call.2} parent=5 // pred_region
        #allocation12 [shape = 'f32[5,5]{1,0}', space=vmem, size = 0x1000, scoped, tag = 'a top-left matrix']
        #allocation13 [shape = 'f32[5,5]{1,0}', space=vmem, size = 0x1000, scoped, tag = 'a top-right matrix']
        #allocation14 [shape = 'f32[5,5]{1,0}', space=vmem, size = 0x1000, scoped, tag = 'a bottom-left matrix']
        #allocation15 [shape = 'f32[5,5]{1,0}', space=vmem, size = 0x1000, scoped, tag = 'a bottom-right matrix']
        %s249 = ssub.s32 %s12, 1
        %s250 = sand.u32 %s17, 1
        %s251 = sand.u32 %s17, 1
        %s252 = smul.addr %s251, 8
        %s253 = scalar_lea.vmem [#allocation0], %s252
        %s254 = sand.u32 %s17, 1
        %s255 = sand.u32 %s17, 1
        %s256 = smul.addr %s255, 8
        %s257 = scalar_lea.vmem [#allocation1], %s256
        %s258 = sand.u32 %s17, 1
        %s259 = sand.u32 %s17, 1
        %s260 = smul.addr %s259, 8
        %s261 = scalar_lea.vmem [#allocation2], %s260
        %s262 = sand.u32 %s17, 1
        %s263 = sand.u32 %s17, 1
        %s264 = smul.addr %s263, 8
        %s265 = scalar_lea.vmem [#allocation3], %s264
        %s266 = sand.u32 %s17, 1
        %s267 = sand.u32 %s17, 1
        %s268 = smul.addr %s267, 8
        %s269 = scalar_lea.vmem [#allocation0], %s268
        %s270 = sand.u32 %s17, 1
        %s271 = sand.u32 %s17, 1
        %s272 = smul.addr %s271, 8
        %s273 = scalar_lea.vmem [#allocation1], %s272
        %s274 = sand.u32 %s17, 1
        %s275 = sand.u32 %s17, 1
        %s276 = smul.addr %s275, 8
        %s277 = scalar_lea.vmem [#allocation2], %s276
        %s278 = sand.u32 %s17, 1
        %s279 = sand.u32 %s17, 1
        %s280 = smul.addr %s279, 8
        %s281 = scalar_lea.vmem [#allocation3], %s280
        %p282 = pneg %p40
        %p283 = pneg %p37
        %s284 = sand.u32 %s27, 1
        %s285 = sand.u32 %s27, 1
        %s286 = smul.addr %s285, 2
        %s287 = scalar_lea.vmem [#allocation5], %s286
        %p288 = pneg %p68
        %p289 = pneg %p65
        %s290 = sand.u32 %s55, 1
        %s291 = sand.u32 %s55, 1
        %s292 = smul.addr %s291, 2
        %s293 = scalar_lea.vmem [#allocation7], %s292
        %s294 = sand.u32 %s17, 1
        %s295 = sand.u32 %s17, 1
        %s296 = smul.addr %s295, 8
        %s297 = scalar_lea.vmem [#allocation8], %s296
        %s298 = sand.u32 %s17, 1
        %s299 = sand.u32 %s17, 1
        %s300 = smul.addr %s299, 8
        %s301 = scalar_lea.vmem [#allocation9], %s300
        %s302 = sand.u32 %s17, 1
        %s303 = sand.u32 %s17, 1
        %s304 = smul.addr %s303, 8
        %s305 = scalar_lea.vmem [#allocation10], %s304
        %s306 = sand.u32 %s17, 1
        %s307 = sand.u32 %s17, 1
        %s308 = smul.addr %s307, 8
        %s309 = scalar_lea.vmem [#allocation11], %s308
        %s310 = sshrl.u32 %s17, 3
        %s311 = sshrl.u32 %s17, 3
        %s312 = smov [#allocation12]
        %v313 = vld [vmem:[%s253] sm:$0xff]
        %314 = vst [vmem:[%s312] sm:$0xff] %v313
        %s315 = smov [#allocation13]
        %v316 = vld [vmem:[%s257] sm:$0xff]
        %317 = vst [vmem:[%s315] sm:$0xff] %v316
        %s318 = smov [#allocation14]
        %v319 = vld [vmem:[%s261] sm:$0xff]
        %320 = vst [vmem:[%s318] sm:$0xff] %v319
        %s321 = smov [#allocation15]
        %v322 = vld [vmem:[%s265] sm:$0xff]
        %323 = vst [vmem:[%s321] sm:$0xff] %v322
        %324 = vst [vmem:[%s297] sm:$0xff] 0.0
        %325 = vst [vmem:[%s301] sm:$0xff] 0.0
        %326 = vst [vmem:[%s305] sm:$0xff] 0.0
        %327 = vst [vmem:[%s309] sm:$0xff] 0.0
        %s328 = smov %s297
        %v329 = vlaneseq
        %v330 = vand.u32 %v329, 127
        %v331 = vmov %v330
        %v332 = vlaneseq
        %v333 = vshrl.u32 %v332, 7
        %v334 = vmov %v333
        %v335 = vld [vmem:[%s328] sm:$0x1f]
        %vm338 = vcmp.eq.s32.totalorder %v334, %v331
        %v339 = vsel %vm338, 1.0, %v335
        %340 = vst [vmem:[%s328] sm:$0x1f] %v339
        %s341 = smov %s309
        %v342 = vlaneseq
        %v343 = vand.u32 %v342, 127
        %v344 = vmov %v343
        %v345 = vlaneseq
        %v346 = vshrl.u32 %v345, 7
        %v347 = vmov %v346
        %v348 = vld [vmem:[%s341] sm:$0x1f]
        %vm351 = vcmp.eq.s32.totalorder %v347, %v344
        %v352 = vsel %vm351, 1.0, %v348
        %353 = vst [vmem:[%s341] sm:$0x1f] %v352
        // While loop
        $region157: #{custom-call.2} parent=155 // loop_pre_header
          _
        $region158: #{custom-call.2} parent=155 // loop_header
          %s355 = sphi 0, %s897
          %v356 = vlaneseq
          %v357 = vand.u32 %v356, 127
          %v358 = vmov %v357
          %v359 = vlaneseq
          %v360 = vshrl.u32 %v359, 7
          %v361 = vmov %v360
          %s362 = smov [#allocation12]
          %v363 = vlaneseq
          %v364 = vand.u32 %v363, 127
          %vm365 = vcmp.ge.s32.totalorder %v364, 0
          %vm366 = vcmp.lt.s32.totalorder %v364, 5
          %vm367 = vmand %vm365, %vm366
          %v368 = vld [vmem:[%s362] sm:$0x1f]
          %v369 = vsel %vm367, %v368, 0.0
          %v370 = vmul.f32 %v369, %v369
          %vm373 = vcmp.eq.s32.totalorder %v361, %v358
          %v374 = vsel %vm373, 0.0, %v370
          %v375 = vlaneseq
          %v376 = vand.u32 %v375, 127
          %v377 = vmov %v376
          %v378 = vlaneseq
          %v379 = vshrl.u32 %v378, 7
          %v380 = vmov %v379
          %s381 = smov [#allocation13]
          %v382 = vlaneseq
          %v383 = vand.u32 %v382, 127
          %vm384 = vcmp.ge.s32.totalorder %v383, 0
          %vm385 = vcmp.lt.s32.totalorder %v383, 5
          %vm386 = vmand %vm384, %vm385
          %v387 = vld [vmem:[%s381] sm:$0x1f]
          %v388 = vsel %vm386, %v387, 0.0
          %v389 = vmul.f32 %v388, %v388
          %v390 = vadd.f32 %v374, %v389
          %v391 = vadd.f32 %v370, %v389
          %v392 = vlaneseq
          %v393 = vand.u32 %v392, 127
          %v394 = vmov %v393
          %v395 = vlaneseq
          %v396 = vshrl.u32 %v395, 7
          %v397 = vmov %v396
          %s398 = smov [#allocation14]
          %v399 = vlaneseq
          %v400 = vand.u32 %v399, 127
          %vm401 = vcmp.ge.s32.totalorder %v400, 0
          %vm402 = vcmp.lt.s32.totalorder %v400, 5
          %vm403 = vmand %vm401, %vm402
          %v404 = vld [vmem:[%s398] sm:$0x1f]
          %v405 = vsel %vm403, %v404, 0.0
          %v406 = vmul.f32 %v405, %v405
          %v407 = vadd.f32 %v390, %v406
          %v408 = vadd.f32 %v391, %v406
          %v409 = vlaneseq
          %v410 = vand.u32 %v409, 127
          %v411 = vmov %v410
          %v412 = vlaneseq
          %v413 = vshrl.u32 %v412, 7
          %v414 = vmov %v413
          %s415 = smov [#allocation15]
          %v416 = vlaneseq
          %v417 = vand.u32 %v416, 127
          %vm418 = vcmp.ge.s32.totalorder %v417, 0
          %vm419 = vcmp.lt.s32.totalorder %v417, 5
          %vm420 = vmand %vm418, %vm419
          %v421 = vld [vmem:[%s415] sm:$0x1f]
          %v422 = vsel %vm420, %v421, 0.0
          %v423 = vmul.f32 %v422, %v422
          %vm426 = vcmp.eq.s32.totalorder %v414, %v411
          %v427 = vsel %vm426, 0.0, %v423
          %v428 = vadd.f32 %v407, %v427
          %v429 = vadd.f32 %v408, %v423
          %430 = vadd.xlane.f32.xlu0 %v429
          %v431 = vpop.xlane.xlu0 %430
          %v432 = vrot.slane %v431, 4
          %v433 = vadd.f32 %v431, %v432
          %v434 = vrot.slane %v433, 2
          %v435 = vadd.f32 %v433, %v434
          %v436 = vrot.slane %v435, 1
          %v437 = vadd.f32 %v435, %v436
          %438 = vadd.xlane.f32.xlu0 %v428
          %v439 = vpop.xlane.xlu0 %438
          %v440 = vrot.slane %v439, 4
          %v441 = vadd.f32 %v439, %v440
          %v442 = vrot.slane %v441, 2
          %v443 = vadd.f32 %v441, %v442
          %v444 = vrot.slane %v443, 1
          %v445 = vadd.f32 %v443, %v444
          %s446 = vtos %v445
          %s447 = vtos %v437
          %s448 = smul.f32 1e-10, %s447
          %p449 = scmp.le.f32.partialorder %s446, %s448
          %p450 = scmp.ge.s32.totalorder %s355, 15
          %p451 = por %p449, %p450
        $region159: #{custom-call.2} parent=155 // loop_header_branch
          %899 = sbr.rel (%p451) target = $region163
        $region160: #{custom-call.2} parent=155 // loop_body
          loop: start=0, step=1, limit=9
          $region164: #{custom-call.2} parent=160 // loop_pre_header
            _
          $region165: #{custom-call.2} parent=160 // loop_header
            %s453 = sphi 0, %s457
            %p454 = scmp.ge.s32.totalorder %s453, 9
          $region166: #{custom-call.2} parent=160 // loop_header_branch
            %456 = sbr.rel (%p454) target = $region170
          $region167: #{custom-call.2} parent=160 // loop_body
            #allocation16 [shape = 'f32[1024]{0}', space=vmem, size = 0x1000, scoped, tag = 'a_tl_diag vmem']
            #allocation17 [shape = 'f32[1024]{0}', space=vmem, size = 0x1000, scoped, tag = 'a_tr_diag vmem']
            #allocation18 [shape = 'f32[1024]{0}', space=vmem, size = 0x1000, scoped, tag = 'a_br_diag vmem']
            #allocation19 [shape = 'f32[1024]{0}', space=vmem, size = 0x1000, scoped, tag = 'rt1 vmem']
            #allocation20 [shape = 'f32[1024]{0}', space=vmem, size = 0x1000, scoped, tag = 'rt2 vmem']
            #allocation21 [shape = 'f32[1024]{0}', space=vmem, size = 0x1000, scoped, tag = 'c vmem']
            #allocation22 [shape = 'f32[1024]{0}', space=vmem, size = 0x1000, scoped, tag = 's vmem']
            #allocation23 [shape = 'f32[4096]{0}', space=vmem, size = 0x4000, scoped, tag = 'c broadcast']
            #allocation24 [shape = 'f32[4096]{0}', space=vmem, size = 0x4000, scoped, tag = 's broadcast']
            %s458 = smov [#allocation12]
            %s459 = smov [#allocation16]
            %v460 = vlaneseq
            %v461 = vand.u32 %v460, 127
            %v462 = vmov %v461
            %v463 = vlaneseq
            %v464 = vshrl.u32 %v463, 7
            %v465 = vmov %v464
            %v466 = vld [vmem:[%s458] sm:$0x1f]
            %vm469 = vcmp.eq.s32.totalorder %v465, %v462
            %v470 = vsel %vm469, %v466, 0.0
            %v471 = vrot.slane %v470, 4
            %v472 = vadd.f32 %v470, %v471
            %v473 = vrot.slane %v472, 2
            %v474 = vadd.f32 %v472, %v473
            %v475 = vrot.slane %v474, 1
            %v476 = vadd.f32 %v474, %v475
            %477 = vst [vmem:[%s459] sm:$0x1] %v476
            %s478 = smov [#allocation13]
            %s479 = smov [#allocation17]
            %v480 = vlaneseq
            %v481 = vand.u32 %v480, 127
            %v482 = vmov %v481
            %v483 = vlaneseq
            %v484 = vshrl.u32 %v483, 7
            %v485 = vmov %v484
            %v486 = vld [vmem:[%s478] sm:$0x1f]
            %vm489 = vcmp.eq.s32.totalorder %v485, %v482
            %v490 = vsel %vm489, %v486, 0.0
            %v491 = vrot.slane %v490, 4
            %v492 = vadd.f32 %v490, %v491
            %v493 = vrot.slane %v492, 2
            %v494 = vadd.f32 %v492, %v493
            %v495 = vrot.slane %v494, 1
            %v496 = vadd.f32 %v494, %v495
            %497 = vst [vmem:[%s479] sm:$0x1] %v496
            %s498 = smov [#allocation15]
            %s499 = smov [#allocation18]
            %v500 = vlaneseq
            %v501 = vand.u32 %v500, 127
            %v502 = vmov %v501
            %v503 = vlaneseq
            %v504 = vshrl.u32 %v503, 7
            %v505 = vmov %v504
            %v506 = vld [vmem:[%s498] sm:$0x1f]
            %vm509 = vcmp.eq.s32.totalorder %v505, %v502
            %v510 = vsel %vm509, %v506, 0.0
            %v511 = vrot.slane %v510, 4
            %v512 = vadd.f32 %v510, %v511
            %v513 = vrot.slane %v512, 2
            %v514 = vadd.f32 %v512, %v513
            %v515 = vrot.slane %v514, 1
            %v516 = vadd.f32 %v514, %v515
            %517 = vst [vmem:[%s499] sm:$0x1] %v516
            %s518 = smov [#allocation21]
            %s519 = smov [#allocation22]
            %s520 = smov [#allocation16]
            %v521 = vld [vmem:[%s520] sm:$0xff]
            %s522 = smov [#allocation17]
            %v523 = vld [vmem:[%s522] sm:$0xff]
            %s524 = smov [#allocation18]
            %v525 = vld [vmem:[%s524] sm:$0xff]
            %v526 = vsub.f32 %v525, %v521
            %v527 = vmul.f32 2.0, %v523
            %v528 = vrcp.pop %v527
            %v529 = vmul.f32 %v526, %v528
            %vm530 = vcmp.ge.f32.partialorder %v529, 0.0
            %v531 = vmul.f32 %v529, %v529
            %v532 = vadd.f32 1.0, %v531
            %v533 = vrsqrt.pop %v532
            %v534 = vmul.f32 %v532, %v533
            %vm535 = vcmp.eq.f32.partialorder %v532, inf
            %v536 = vsel %vm535, %v532, %v534
            %vm537 = vcmp.eq.f32.partialorder %v532, 0.0
            %v538 = vand.u32 %v532, 2147483648
            %v539 = vsel %vm537, %v538, %v536
            %v540 = vxor.u32 %v539, 2147483648
            %v541 = vsel %vm530, %v539, %v540
            %v542 = vadd.f32 %v529, %v541
            %v543 = vrcp.pop %v542
            %v544 = vand.u32 2147483647, %v521
            %v545 = vand.u32 2147483647, %v523
            %v546 = vand.u32 2147483647, %v525
            %v547 = vmin.f32 %v544, %v546
            %v548 = vmul.f32 1.1920929e-08, %v547
            %vm549 = vcmp.le.f32.partialorder %v545, %v548
            %v550 = vsel %vm549, 0.0, %v543
            %v551 = vmul.f32 %v550, %v550
            %v552 = vadd.f32 1.0, %v551
            %v553 = vrsqrt.pop %v552
            %v554 = vmul.f32 %v550, %v553
            %v555 = vmul.f32 %v550, %v523
            %v556 = vsub.f32 %v521, %v555
            %v557 = vmul.f32 %v550, %v523
            %v558 = vadd.f32 %v525, %v557
            %s559 = smov [#allocation19]
            %560 = vst [vmem:[%s559] sm:$0xff] %v556
            %s561 = smov [#allocation20]
            %562 = vst [vmem:[%s561] sm:$0xff] %v558
            %s563 = smov %s518
            %564 = vst [vmem:[%s563] sm:$0xff] %v553
            %s565 = smov %s519
            %566 = vst [vmem:[%s565] sm:$0xff] %v554
            %s567 = smov [#allocation21]
            %v568 = vld [vmem:[%s567] ss:$0 sm:$0xff]
            %v569 = vlaneseq
            %v570 = vand.u32 %v569, 127
            %v571 = vmov %v570
            %v572 = vlaneseq
            %v573 = vshrl.u32 %v572, 7
            %v574 = vmov %v573
            %vm576 = vcmp.eq.s32.totalorder %v574, %v571
            %v577 = vsel %vm576, %v568, 0.0
            %578 = vadd.xlane.f32.xlu0 %v577
            %v579 = vpop.xlane.xlu0 %578
            %s580 = smov [#allocation23]
            %581 = vst [vmem:[%s580] sm:$0xff] %v579
            %s582 = smov [#allocation22]
            %v583 = vld [vmem:[%s582] ss:$0 sm:$0xff]
            %v584 = vlaneseq
            %v585 = vand.u32 %v584, 127
            %v586 = vmov %v585
            %v587 = vlaneseq
            %v588 = vshrl.u32 %v587, 7
            %v589 = vmov %v588
            %vm591 = vcmp.eq.s32.totalorder %v589, %v586
            %v592 = vsel %vm591, %v583, 0.0
            %593 = vadd.xlane.f32.xlu0 %v592
            %v594 = vpop.xlane.xlu0 %593
            %s595 = smov [#allocation24]
            %596 = vst [vmem:[%s595] sm:$0xff] %v594
            %s597 = smov [#allocation23]
            %v598 = vld [vmem:[%s597] sm:$0xff]
            %s599 = smov [#allocation24]
            %v600 = vld [vmem:[%s599] sm:$0xff]
            %s601 = smov [#allocation12]
            %s602 = smov [#allocation13]
            %s603 = smov [#allocation14]
            %s604 = smov [#allocation15]
            %v605 = vld [vmem:[%s601] sm:$0x1f]
            %v606 = vld [vmem:[%s602] sm:$0x1f]
            %v607 = vld [vmem:[%s603] sm:$0x1f]
            %v608 = vld [vmem:[%s604] sm:$0x1f]
            %v609 = vmul.f32 %v598, %v605
            %v610 = vmul.f32 %v600, %v607
            %v611 = vsub.f32 %v609, %v610
            %v612 = vmul.f32 %v598, %v606
            %v613 = vmul.f32 %v600, %v608
            %v614 = vsub.f32 %v612, %v613
            %v615 = vmul.f32 %v600, %v605
            %v616 = vmul.f32 %v598, %v607
            %v617 = vadd.f32 %v615, %v616
            %v618 = vmul.f32 %v600, %v606
            %v619 = vmul.f32 %v598, %v608
            %v620 = vadd.f32 %v618, %v619
            %621 = vst [vmem:[%s601] sm:$0x1f] %v611
            %622 = vst [vmem:[%s602] sm:$0x1f] %v614
            %623 = vst [vmem:[%s603] sm:$0x1f] %v617
            %624 = vst [vmem:[%s604] sm:$0x1f] %v620
            %s625 = smov [#allocation21]
            %v626 = vld [vmem:[%s625] ss:$0 sm:$0xff]
            %s627 = smov [#allocation22]
            %v628 = vld [vmem:[%s627] ss:$0 sm:$0xff]
            %s629 = smov [#allocation12]
            %s630 = smov [#allocation13]
            %s631 = smov [#allocation14]
            %s632 = smov [#allocation15]
            %v633 = vld [vmem:[%s629] sm:$0x1f]
            %v634 = vld [vmem:[%s630] sm:$0x1f]
            %v635 = vld [vmem:[%s631] sm:$0x1f]
            %v636 = vld [vmem:[%s632] sm:$0x1f]
            %v637 = vmul.f32 %v626, %v633
            %v638 = vmul.f32 %v628, %v634
            %v639 = vsub.f32 %v637, %v638
            %v640 = vmul.f32 %v628, %v633
            %v641 = vmul.f32 %v626, %v634
            %v642 = vadd.f32 %v640, %v641
            %v643 = vmul.f32 %v626, %v635
            %v644 = vmul.f32 %v628, %v636
            %v645 = vsub.f32 %v643, %v644
            %v646 = vmul.f32 %v628, %v635
            %v647 = vmul.f32 %v626, %v636
            %v648 = vadd.f32 %v646, %v647
            %649 = vst [vmem:[%s629] sm:$0x1f] %v639
            %650 = vst [vmem:[%s630] sm:$0x1f] %v642
            %651 = vst [vmem:[%s631] sm:$0x1f] %v645
            %652 = vst [vmem:[%s632] sm:$0x1f] %v648
            %s653 = smov [#allocation12]
            %s654 = smov [#allocation19]
            %v655 = vlaneseq
            %v656 = vand.u32 %v655, 127
            %v657 = vmov %v656
            %v658 = vlaneseq
            %v659 = vshrl.u32 %v658, 7
            %v660 = vmov %v659
            %v661 = vld [vmem:[%s654] ss:$0 sm:$0xff]
            %v662 = vld [vmem:[%s653] sm:$0x1f]
            %vm665 = vcmp.eq.s32.totalorder %v660, %v657
            %v666 = vsel %vm665, %v661, %v662
            %667 = vst [vmem:[%s653] sm:$0x1f] %v666
            %s668 = smov [#allocation13]
            %v669 = vlaneseq
            %v670 = vand.u32 %v669, 127
            %v671 = vmov %v670
            %v672 = vlaneseq
            %v673 = vshrl.u32 %v672, 7
            %v674 = vmov %v673
            %v675 = vld [vmem:[%s668] sm:$0x1f]
            %vm678 = vcmp.eq.s32.totalorder %v674, %v671
            %v679 = vsel %vm678, 0.0, %v675
            %680 = vst [vmem:[%s668] sm:$0x1f] %v679
            %s681 = smov [#allocation14]
            %v682 = vlaneseq
            %v683 = vand.u32 %v682, 127
            %v684 = vmov %v683
            %v685 = vlaneseq
            %v686 = vshrl.u32 %v685, 7
            %v687 = vmov %v686
            %v688 = vld [vmem:[%s681] sm:$0x1f]
            %vm691 = vcmp.eq.s32.totalorder %v687, %v684
            %v692 = vsel %vm691, 0.0, %v688
            %693 = vst [vmem:[%s681] sm:$0x1f] %v692
            %s694 = smov [#allocation15]
            %s695 = smov [#allocation20]
            %v696 = vlaneseq
            %v697 = vand.u32 %v696, 127
            %v698 = vmov %v697
            %v699 = vlaneseq
            %v700 = vshrl.u32 %v699, 7
            %v701 = vmov %v700
            %v702 = vld [vmem:[%s695] ss:$0 sm:$0xff]
            %v703 = vld [vmem:[%s694] sm:$0x1f]
            %vm706 = vcmp.eq.s32.totalorder %v701, %v698
            %v707 = vsel %vm706, %v702, %v703
            %708 = vst [vmem:[%s694] sm:$0x1f] %v707
            %s709 = smov [#allocation12]
            %s710 = smov [#allocation13]
            %v711 = vld [vmem:[%s710] sm:$0x1f]
            %712 = vrot.lane.b32.xlu0 %v711, 1
            %v713 = vpop.permute.xlu0 %712
            %v714 = vld [vmem:[%s709] sm:$0x1f]
            %v715 = vld [vmem:[%s709] sm:$0x1f]
            %716 = vrot.lane.b32.xlu0 %v715, 1
            %v717 = vpop.permute.xlu0 %716
            %v718 = vlaneseq
            %v719 = vand.u32 %v718, 127
            %vm720 = vcmp.eq.s32.totalorder %v719, 0
            %v721 = vsel %vm720, %v715, %v717
            %v722 = vlaneseq
            %v723 = vand.u32 %v722, 127
            %vm724 = vcmp.eq.s32.totalorder %v723, 1
            %v725 = vsel %vm724, %v713, %v721
            %v726 = vlaneseq
            %v727 = vand.u32 %v726, 127
            %vm728 = vcmp.ge.s32.totalorder %v727, 0
            %vm729 = vcmp.lt.s32.totalorder %v727, 5
            %vm730 = vmand %vm728, %vm729
            %v731 = vsel %vm730, %v725, 0.0
            %v732 = vld [vmem:[%s710] sm:$0x1f]
            %733 = vrot.lane.b32.xlu0 %v732, 127
            %v734 = vpop.permute.xlu0 %733
            %v735 = vlaneseq
            %v736 = vand.u32 %v735, 127
            %vm737 = vcmp.eq.s32.totalorder %v736, 4
            %v738 = vsel %vm737, %v714, %v734
            %739 = vst [vmem:[%s709] sm:$0x1f] %v731
            %740 = vst [vmem:[%s710] sm:$0x1f] %v738
            %s741 = smov [#allocation14]
            %s742 = smov [#allocation15]
            %v743 = vld [vmem:[%s742] sm:$0x1f]
            %744 = vrot.lane.b32.xlu0 %v743, 1
            %v745 = vpop.permute.xlu0 %744
            %v746 = vld [vmem:[%s741] sm:$0x1f]
            %v747 = vld [vmem:[%s741] sm:$0x1f]
            %748 = vrot.lane.b32.xlu0 %v747, 1
            %v749 = vpop.permute.xlu0 %748
            %v750 = vlaneseq
            %v751 = vand.u32 %v750, 127
            %vm752 = vcmp.eq.s32.totalorder %v751, 0
            %v753 = vsel %vm752, %v747, %v749
            %v754 = vlaneseq
            %v755 = vand.u32 %v754, 127
            %vm756 = vcmp.eq.s32.totalorder %v755, 1
            %v757 = vsel %vm756, %v745, %v753
            %v758 = vlaneseq
            %v759 = vand.u32 %v758, 127
            %vm760 = vcmp.ge.s32.totalorder %v759, 0
            %vm761 = vcmp.lt.s32.totalorder %v759, 5
            %vm762 = vmand %vm760, %vm761
            %v763 = vsel %vm762, %v757, 0.0
            %v764 = vld [vmem:[%s742] sm:$0x1f]
            %765 = vrot.lane.b32.xlu0 %v764, 127
            %v766 = vpop.permute.xlu0 %765
            %v767 = vlaneseq
            %v768 = vand.u32 %v767, 127
            %vm769 = vcmp.eq.s32.totalorder %v768, 4
            %v770 = vsel %vm769, %v746, %v766
            %771 = vst [vmem:[%s741] sm:$0x1f] %v763
            %772 = vst [vmem:[%s742] sm:$0x1f] %v770
            %s773 = smov [#allocation12]
            %s774 = smov [#allocation14]
            %v775 = vld [vmem:[%s773] ss:$0 sm:$0xff]
            %s777 = scalar_lea.vmem %s773, 4294967295
            %v778 = vld [vmem:[%s777] sm:$0x1e]
            %v779 = vlaneseq
            %v780 = vshrl.u32 %v779, 7
            %vm781 = vcmp.eq.s32.totalorder %v780, 0
            %v782 = vsel %vm781, %v775, %v778
            %s783 = scalar_lea.vmem %s773, 4
            %v784 = vld [vmem:[%s783] ss:$0 sm:$0xff]
            %785 = vst [vmem:[%s773] sm:$0x1f] %v782
            %v786 = vld [vmem:[%s774] ss:$0 sm:$0xff]
            %s787 = scalar_lea.vmem %s773, 1
            %788 = vst [vmem:[%s787] sm:$0x1] %v786
            %s789 = scalar_lea.vmem %s774, 1
            %v790 = vld [vmem:[%s789] sm:$0xf]
            %v791 = vlaneseq
            %v792 = vshrl.u32 %v791, 7
            %vm793 = vcmp.eq.s32.totalorder %v792, 4
            %v794 = vsel %vm793, %v784, %v790
            %v795 = vld [vmem:[%s774] ss:$0 sm:$0xff]
            %796 = vst [vmem:[%s774] sm:$0x1f] %v794
            %s797 = smov [#allocation13]
            %s798 = smov [#allocation15]
            %v799 = vld [vmem:[%s797] ss:$0 sm:$0xff]
            %s801 = scalar_lea.vmem %s797, 4294967295
            %v802 = vld [vmem:[%s801] sm:$0x1e]
            %v803 = vlaneseq
            %v804 = vshrl.u32 %v803, 7
            %vm805 = vcmp.eq.s32.totalorder %v804, 0
            %v806 = vsel %vm805, %v799, %v802
            %s807 = scalar_lea.vmem %s797, 4
            %v808 = vld [vmem:[%s807] ss:$0 sm:$0xff]
            %809 = vst [vmem:[%s797] sm:$0x1f] %v806
            %v810 = vld [vmem:[%s798] ss:$0 sm:$0xff]
            %s811 = scalar_lea.vmem %s797, 1
            %812 = vst [vmem:[%s811] sm:$0x1] %v810
            %s813 = scalar_lea.vmem %s798, 1
            %v814 = vld [vmem:[%s813] sm:$0xf]
            %v815 = vlaneseq
            %v816 = vshrl.u32 %v815, 7
            %vm817 = vcmp.eq.s32.totalorder %v816, 4
            %v818 = vsel %vm817, %v808, %v814
            %v819 = vld [vmem:[%s798] ss:$0 sm:$0xff]
            %820 = vst [vmem:[%s798] sm:$0x1f] %v818
            %s821 = smov [#allocation23]
            %v822 = vld [vmem:[%s821] sm:$0xff]
            %s823 = smov [#allocation24]
            %v824 = vld [vmem:[%s823] sm:$0xff]
            %s825 = smov %s297
            %s826 = smov %s301
            %s827 = smov %s305
            %s828 = smov %s309
            %v829 = vld [vmem:[%s825] sm:$0x1f]
            %v830 = vld [vmem:[%s826] sm:$0x1f]
            %v831 = vld [vmem:[%s827] sm:$0x1f]
            %v832 = vld [vmem:[%s828] sm:$0x1f]
            %v833 = vmul.f32 %v822, %v829
            %v834 = vmul.f32 %v824, %v831
            %v835 = vsub.f32 %v833, %v834
            %v836 = vmul.f32 %v822, %v830
            %v837 = vmul.f32 %v824, %v832
            %v838 = vsub.f32 %v836, %v837
            %v839 = vmul.f32 %v824, %v829
            %v840 = vmul.f32 %v822, %v831
            %v841 = vadd.f32 %v839, %v840
            %v842 = vmul.f32 %v824, %v830
            %v843 = vmul.f32 %v822, %v832
            %v844 = vadd.f32 %v842, %v843
            %845 = vst [vmem:[%s825] sm:$0x1f] %v835
            %846 = vst [vmem:[%s826] sm:$0x1f] %v838
            %847 = vst [vmem:[%s827] sm:$0x1f] %v841
            %848 = vst [vmem:[%s828] sm:$0x1f] %v844
            %s849 = smov %s297
            %s850 = smov %s305
            %v851 = vld [vmem:[%s849] ss:$0 sm:$0xff]
            %s853 = scalar_lea.vmem %s849, 4294967295
            %v854 = vld [vmem:[%s853] sm:$0x1e]
            %v855 = vlaneseq
            %v856 = vshrl.u32 %v855, 7
            %vm857 = vcmp.eq.s32.totalorder %v856, 0
            %v858 = vsel %vm857, %v851, %v854
            %s859 = scalar_lea.vmem %s849, 4
            %v860 = vld [vmem:[%s859] ss:$0 sm:$0xff]
            %861 = vst [vmem:[%s849] sm:$0x1f] %v858
            %v862 = vld [vmem:[%s850] ss:$0 sm:$0xff]
            %s863 = scalar_lea.vmem %s849, 1
            %864 = vst [vmem:[%s863] sm:$0x1] %v862
            %s865 = scalar_lea.vmem %s850, 1
            %v866 = vld [vmem:[%s865] sm:$0xf]
            %v867 = vlaneseq
            %v868 = vshrl.u32 %v867, 7
            %vm869 = vcmp.eq.s32.totalorder %v868, 4
            %v870 = vsel %vm869, %v860, %v866
            %v871 = vld [vmem:[%s850] ss:$0 sm:$0xff]
            %872 = vst [vmem:[%s850] sm:$0x1f] %v870
            %s873 = smov %s301
            %s874 = smov %s309
            %v875 = vld [vmem:[%s873] ss:$0 sm:$0xff]
            %s877 = scalar_lea.vmem %s873, 4294967295
            %v878 = vld [vmem:[%s877] sm:$0x1e]
            %v879 = vlaneseq
            %v880 = vshrl.u32 %v879, 7
            %vm881 = vcmp.eq.s32.totalorder %v880, 0
            %v882 = vsel %vm881, %v875, %v878
            %s883 = scalar_lea.vmem %s873, 4
            %v884 = vld [vmem:[%s883] ss:$0 sm:$0xff]
            %885 = vst [vmem:[%s873] sm:$0x1f] %v882
            %v886 = vld [vmem:[%s874] ss:$0 sm:$0xff]
            %s887 = scalar_lea.vmem %s873, 1
            %888 = vst [vmem:[%s887] sm:$0x1] %v886
            %s889 = scalar_lea.vmem %s874, 1
            %v890 = vld [vmem:[%s889] sm:$0xf]
            %v891 = vlaneseq
            %v892 = vshrl.u32 %v891, 7
            %vm893 = vcmp.eq.s32.totalorder %v892, 4
            %v894 = vsel %vm893, %v884, %v890
            %v895 = vld [vmem:[%s874] ss:$0 sm:$0xff]
            %896 = vst [vmem:[%s874] sm:$0x1f] %v894
          $region168: #{custom-call.2} parent=160 // loop_footer
            %s457 = sadd.s32 1, %s453
          $region169: #{custom-call.2} parent=160 // loop_footer_branch
            %452 = sbr.rel target = $region165
          $region170: #{custom-call.2} parent=160 // loop_exit
            _
          %s897 = sadd.s32 %s355, 1
        $region161: #{custom-call.2} parent=155 // loop_footer
          _
        $region162: #{custom-call.2} parent=155 // loop_footer_branch
          %354 = sbr.rel target = $region158
        $region163: #{custom-call.2} parent=155 // loop_exit
          _
        %s900 = sand.u32 %s17, 7
        %s901 = scalar_lea.vmem [#allocation4], %s900
        %s902 = sand.u32 %s17, 7
        %s903 = scalar_lea.vmem [#allocation6], %s902
        %s904 = smov [#allocation12]
        %s905 = smov %s901
        %v906 = vlaneseq
        %v907 = vand.u32 %v906, 127
        %v908 = vmov %v907
        %v909 = vlaneseq
        %v910 = vshrl.u32 %v909, 7
        %v911 = vmov %v910
        %v912 = vld [vmem:[%s904] sm:$0x1f]
        %vm915 = vcmp.eq.s32.totalorder %v911, %v908
        %v916 = vsel %vm915, %v912, 0.0
        %v917 = vrot.slane %v916, 4
        %v918 = vadd.f32 %v916, %v917
        %v919 = vrot.slane %v918, 2
        %v920 = vadd.f32 %v918, %v919
        %v921 = vrot.slane %v920, 1
        %v922 = vadd.f32 %v920, %v921
        %923 = vst [vmem:[%s905] sm:$0x1] %v922
        %s924 = smov [#allocation15]
        %s925 = smov %s903
        %v926 = vlaneseq
        %v927 = vand.u32 %v926, 127
        %v928 = vmov %v927
        %v929 = vlaneseq
        %v930 = vshrl.u32 %v929, 7
        %v931 = vmov %v930
        %v932 = vld [vmem:[%s924] sm:$0x1f]
        %vm935 = vcmp.eq.s32.totalorder %v931, %v928
        %v936 = vsel %vm935, %v932, 0.0
        %v937 = vrot.slane %v936, 4
        %v938 = vadd.f32 %v936, %v937
        %v939 = vrot.slane %v938, 2
        %v940 = vadd.f32 %v938, %v939
        %v941 = vrot.slane %v940, 1
        %v942 = vadd.f32 %v940, %v941
        %943 = vst [vmem:[%s925] sm:$0x1] %v942
        %s945 = sshll.u32 1, 2
        %s946 = ssub.s32 %s945, 1
        %v948 = vld [vmem:[#allocation4] sm:%s946]
        %s949 = sshll.u32 1, 2
        %s950 = ssub.s32 %s949, 1
        %951 = vst [vmem:[%s287] sm:%s950] %v948
        %s953 = sshll.u32 1, 2
        %s954 = ssub.s32 %s953, 1
        %v956 = vld [vmem:[#allocation6] sm:%s954]
        %s957 = sshll.u32 1, 2
        %s958 = ssub.s32 %s957, 1
        %959 = vst [vmem:[%s293] sm:%s958] %v956
        %s960 = sand.u32 %s27, 1
        %s961 = sand.u32 %s27, 1
        %s962 = smul.addr %s961, 2
        %s963 = scalar_lea.vmem [#allocation5], %s962
        %s964 = sand.u32 %s55, 1
        %s965 = sand.u32 %s55, 1
        %s966 = smul.addr %s965, 2
        %s967 = scalar_lea.vmem [#allocation7], %s966
        %s968 = sand.u32 %s17, 1
        %s969 = sand.u32 %s17, 1
        %s970 = smul.addr %s969, 8
        %s971 = scalar_lea.vmem [#allocation8], %s970
        %s972 = sand.u32 %s17, 1
        %s973 = sand.u32 %s17, 1
        %s974 = smul.addr %s973, 8
        %s975 = scalar_lea.vmem [#allocation9], %s974
        %s976 = sand.u32 %s17, 1
        %s977 = sand.u32 %s17, 1
        %s978 = smul.addr %s977, 8
        %s979 = scalar_lea.vmem [#allocation10], %s978
        %s980 = sand.u32 %s17, 1
        %s981 = sand.u32 %s17, 1
        %s982 = smul.addr %s981, 8
        %s983 = scalar_lea.vmem [#allocation11], %s982
        // Predicated region
        $region171: #{custom-call.2} parent=155 // pred_check
          %p984 = pneg %p37
        $region172: #{custom-call.2} parent=155 // pred_check_branch
          %986 = sbr.rel (%p984) target = $region174
        $region173: #{custom-call.2} parent=155 // pred_region
          %s987 = sshrl.u32 %s17, 3
          %s988 = smul.addr %s987, 2
          %s989 = scalar_lea.vmem %s4, %s988
          // Predicated region
          $region175: #{custom-call.2} parent=173 // pred_check
            _
          $region176: #{custom-call.2} parent=173 // pred_check_branch
            %991 = sbr.rel (0) target = $region178
          $region177: #{custom-call.2} parent=173 // pred_region
            // Predicated region
            $region179: #{custom-call.2} parent=177 // pred_check
              _
            $region180: #{custom-call.2} parent=177 // pred_check_branch
              %993 = sbr.rel target = $region182
            $region181: #{custom-call.2} parent=177 // pred_region
              // Predicated region
              $region194: #{custom-call.2} parent=181 // pred_check
                _
              $region195: #{custom-call.2} parent=181 // pred_check_branch
                %1009 = sbr.rel (0) target = $region197
              $region196: #{custom-call.2} parent=181 // pred_region
                %s1011 = ssub.s32 4, 1
                loop: start=0, step=1, limit=1
                $region198: #{custom-call.2} parent=196 // loop_pre_header
                  _
                $region199: #{custom-call.2} parent=196 // loop_header
                  %s1013 = sphi 0, %s1017
                  %p1014 = scmp.ge.s32.totalorder %s1013, 1
                  %s1018 = sphi %s963, %s963
                  %s1019 = sphi %s989, %s989
                $region200: #{custom-call.2} parent=196 // loop_header_branch
                  %1016 = sbr.rel (%p1014) target = $region204
                $region201: #{custom-call.2} parent=196 // loop_body
                  %v1020 = vld [vmem:[%s1018] sm:%s1011]
                  %1021 = vst [vmem:[%s1019] sm:%s1011] %v1020
                $region202: #{custom-call.2} parent=196 // loop_footer
                  %s1017 = sadd.s32 1, %s1013
                $region203: #{custom-call.2} parent=196 // loop_footer_branch
                  %1012 = sbr.rel target = $region199
                $region204: #{custom-call.2} parent=196 // loop_exit
                  _
              $region197: #{custom-call.2} parent=181 // pred_fallthru
                _
            $region182: #{custom-call.2} parent=177 // pred_fallthru
              _
            // Predicated region
            $region183: #{custom-call.2} parent=177 // pred_check
              _
            $region184: #{custom-call.2} parent=177 // pred_check_branch
              %995 = sbr.rel (0) target = $region186
            $region185: #{custom-call.2} parent=177 // pred_region
              %s997 = ssub.s32 4, 1
              loop: start=0, step=1, limit=1
              $region187: #{custom-call.2} parent=185 // loop_pre_header
                _
              $region188: #{custom-call.2} parent=185 // loop_header
                %s999 = sphi 0, %s1003
                %p1000 = scmp.ge.s32.totalorder %s999, 1
                %s1004 = sphi %s963, %s963
                %s1005 = sphi %s989, %s989
              $region189: #{custom-call.2} parent=185 // loop_header_branch
                %1002 = sbr.rel (%p1000) target = $region193
              $region190: #{custom-call.2} parent=185 // loop_body
                %v1006 = vld [vmem:[%s1004] sm:%s997]
                %1007 = vst [vmem:[%s1005] sm:%s997] %v1006
              $region191: #{custom-call.2} parent=185 // loop_footer
                %s1003 = sadd.s32 1, %s999
              $region192: #{custom-call.2} parent=185 // loop_footer_branch
                %998 = sbr.rel target = $region188
              $region193: #{custom-call.2} parent=185 // loop_exit
                _
            $region186: #{custom-call.2} parent=177 // pred_fallthru
              _
          $region178: #{custom-call.2} parent=173 // pred_fallthru
            _
          %1022 = vnop
        $region174: #{custom-call.2} parent=155 // pred_fallthru
          _
        // Predicated region
        $region205: #{custom-call.2} parent=155 // pred_check
          %p1023 = pneg %p65
        $region206: #{custom-call.2} parent=155 // pred_check_branch
          %1025 = sbr.rel (%p1023) target = $region208
        $region207: #{custom-call.2} parent=155 // pred_region
          %s1026 = sshrl.u32 %s17, 3
          %s1027 = smul.addr %s1026, 2
          %s1028 = scalar_lea.vmem %s5, %s1027
          // Predicated region
          $region209: #{custom-call.2} parent=207 // pred_check
            _
          $region210: #{custom-call.2} parent=207 // pred_check_branch
            %1030 = sbr.rel (0) target = $region212
          $region211: #{custom-call.2} parent=207 // pred_region
            // Predicated region
            $region213: #{custom-call.2} parent=211 // pred_check
              _
            $region214: #{custom-call.2} parent=211 // pred_check_branch
              %1032 = sbr.rel target = $region216
            $region215: #{custom-call.2} parent=211 // pred_region
              // Predicated region
              $region228: #{custom-call.2} parent=215 // pred_check
                _
              $region229: #{custom-call.2} parent=215 // pred_check_branch
                %1048 = sbr.rel (0) target = $region231
              $region230: #{custom-call.2} parent=215 // pred_region
                %s1050 = ssub.s32 4, 1
                loop: start=0, step=1, limit=1
                $region232: #{custom-call.2} parent=230 // loop_pre_header
                  _
                $region233: #{custom-call.2} parent=230 // loop_header
                  %s1052 = sphi 0, %s1056
                  %p1053 = scmp.ge.s32.totalorder %s1052, 1
                  %s1057 = sphi %s967, %s967
                  %s1058 = sphi %s1028, %s1028
                $region234: #{custom-call.2} parent=230 // loop_header_branch
                  %1055 = sbr.rel (%p1053) target = $region238
                $region235: #{custom-call.2} parent=230 // loop_body
                  %v1059 = vld [vmem:[%s1057] sm:%s1050]
                  %1060 = vst [vmem:[%s1058] sm:%s1050] %v1059
                $region236: #{custom-call.2} parent=230 // loop_footer
                  %s1056 = sadd.s32 1, %s1052
                $region237: #{custom-call.2} parent=230 // loop_footer_branch
                  %1051 = sbr.rel target = $region233
                $region238: #{custom-call.2} parent=230 // loop_exit
                  _
              $region231: #{custom-call.2} parent=215 // pred_fallthru
                _
            $region216: #{custom-call.2} parent=211 // pred_fallthru
              _
            // Predicated region
            $region217: #{custom-call.2} parent=211 // pred_check
              _
            $region218: #{custom-call.2} parent=211 // pred_check_branch
              %1034 = sbr.rel (0) target = $region220
            $region219: #{custom-call.2} parent=211 // pred_region
              %s1036 = ssub.s32 4, 1
              loop: start=0, step=1, limit=1
              $region221: #{custom-call.2} parent=219 // loop_pre_header
                _
              $region222: #{custom-call.2} parent=219 // loop_header
                %s1038 = sphi 0, %s1042
                %p1039 = scmp.ge.s32.totalorder %s1038, 1
                %s1043 = sphi %s967, %s967
                %s1044 = sphi %s1028, %s1028
              $region223: #{custom-call.2} parent=219 // loop_header_branch
                %1041 = sbr.rel (%p1039) target = $region227
              $region224: #{custom-call.2} parent=219 // loop_body
                %v1045 = vld [vmem:[%s1043] sm:%s1036]
                %1046 = vst [vmem:[%s1044] sm:%s1036] %v1045
              $region225: #{custom-call.2} parent=219 // loop_footer
                %s1042 = sadd.s32 1, %s1038
              $region226: #{custom-call.2} parent=219 // loop_footer_branch
                %1037 = sbr.rel target = $region222
              $region227: #{custom-call.2} parent=219 // loop_exit
                _
            $region220: #{custom-call.2} parent=211 // pred_fallthru
              _
          $region212: #{custom-call.2} parent=207 // pred_fallthru
            _
          %1061 = vnop
        $region208: #{custom-call.2} parent=155 // pred_fallthru
          _
        %s1062 = smul.addr %s17, 8
        %s1063 = scalar_lea.vmem %s6, %s1062
        // Predicated region
        $region239: #{custom-call.2} parent=155 // pred_check
          _
        $region240: #{custom-call.2} parent=155 // pred_check_branch
          %1065 = sbr.rel (0) target = $region242
        $region241: #{custom-call.2} parent=155 // pred_region
          // Predicated region
          $region243: #{custom-call.2} parent=241 // pred_check
            _
          $region244: #{custom-call.2} parent=241 // pred_check_branch
            %1067 = sbr.rel (0) target = $region246
          $region245: #{custom-call.2} parent=241 // pred_region
            // Predicated region
            $region258: #{custom-call.2} parent=245 // pred_check
              _
            $region259: #{custom-call.2} parent=245 // pred_check_branch
              %1083 = sbr.rel (0) target = $region261
            $region260: #{custom-call.2} parent=245 // pred_region
              loop: start=0, step=1, limit=1
              $region262: #{custom-call.2} parent=260 // loop_pre_header
                _
              $region263: #{custom-call.2} parent=260 // loop_header
                %s1085 = sphi 0, %s1089
                %p1086 = scmp.ge.s32.totalorder %s1085, 1
                %s1090 = sphi %s971, %s971
                %s1091 = sphi %s1063, %s1063
              $region264: #{custom-call.2} parent=260 // loop_header_branch
                %1088 = sbr.rel (%p1086) target = $region268
              $region265: #{custom-call.2} parent=260 // loop_body
                %v1092 = vld [vmem:[%s1090] sm:$0xff]
                %1093 = vst [vmem:[%s1091] sm:$0xff] %v1092
              $region266: #{custom-call.2} parent=260 // loop_footer
                %s1089 = sadd.s32 1, %s1085
              $region267: #{custom-call.2} parent=260 // loop_footer_branch
                %1084 = sbr.rel target = $region263
              $region268: #{custom-call.2} parent=260 // loop_exit
                _
            $region261: #{custom-call.2} parent=245 // pred_fallthru
              _
            // Predicated region
            $region269: #{custom-call.2} parent=245 // pred_check
              _
            $region270: #{custom-call.2} parent=245 // pred_check_branch
              %1095 = sbr.rel target = $region272
            $region271: #{custom-call.2} parent=245 // pred_region
              _
            $region272: #{custom-call.2} parent=245 // pred_fallthru
              _
          $region246: #{custom-call.2} parent=241 // pred_fallthru
            _
          // Predicated region
          $region247: #{custom-call.2} parent=241 // pred_check
            _
          $region248: #{custom-call.2} parent=241 // pred_check_branch
            %1069 = sbr.rel target = $region250
          $region249: #{custom-call.2} parent=241 // pred_region
            %s1071 = ssub.s32 256, 1
            loop: start=0, step=1, limit=1
            $region251: #{custom-call.2} parent=249 // loop_pre_header
              _
            $region252: #{custom-call.2} parent=249 // loop_header
              %s1073 = sphi 0, %s1077
              %p1074 = scmp.ge.s32.totalorder %s1073, 1
              %s1078 = sphi %s971, %s971
              %s1079 = sphi %s1063, %s1063
            $region253: #{custom-call.2} parent=249 // loop_header_branch
              %1076 = sbr.rel (%p1074) target = $region257
            $region254: #{custom-call.2} parent=249 // loop_body
              %v1080 = vld [vmem:[%s1078] sm:%s1071]
              %1081 = vst [vmem:[%s1079] sm:%s1071] %v1080
            $region255: #{custom-call.2} parent=249 // loop_footer
              %s1077 = sadd.s32 1, %s1073
            $region256: #{custom-call.2} parent=249 // loop_footer_branch
              %1072 = sbr.rel target = $region252
            $region257: #{custom-call.2} parent=249 // loop_exit
              _
          $region250: #{custom-call.2} parent=241 // pred_fallthru
            _
        $region242: #{custom-call.2} parent=155 // pred_fallthru
          _
        %1096 = vnop
        %s1097 = smul.addr %s17, 8
        %s1098 = scalar_lea.vmem %s7, %s1097
        // Predicated region
        $region273: #{custom-call.2} parent=155 // pred_check
          _
        $region274: #{custom-call.2} parent=155 // pred_check_branch
          %1100 = sbr.rel (0) target = $region276
        $region275: #{custom-call.2} parent=155 // pred_region
          // Predicated region
          $region277: #{custom-call.2} parent=275 // pred_check
            _
          $region278: #{custom-call.2} parent=275 // pred_check_branch
            %1102 = sbr.rel (0) target = $region280
          $region279: #{custom-call.2} parent=275 // pred_region
            // Predicated region
            $region292: #{custom-call.2} parent=279 // pred_check
              _
            $region293: #{custom-call.2} parent=279 // pred_check_branch
              %1118 = sbr.rel (0) target = $region295
            $region294: #{custom-call.2} parent=279 // pred_region
              loop: start=0, step=1, limit=1
              $region296: #{custom-call.2} parent=294 // loop_pre_header
                _
              $region297: #{custom-call.2} parent=294 // loop_header
                %s1120 = sphi 0, %s1124
                %p1121 = scmp.ge.s32.totalorder %s1120, 1
                %s1125 = sphi %s975, %s975
                %s1126 = sphi %s1098, %s1098
              $region298: #{custom-call.2} parent=294 // loop_header_branch
                %1123 = sbr.rel (%p1121) target = $region302
              $region299: #{custom-call.2} parent=294 // loop_body
                %v1127 = vld [vmem:[%s1125] sm:$0xff]
                %1128 = vst [vmem:[%s1126] sm:$0xff] %v1127
              $region300: #{custom-call.2} parent=294 // loop_footer
                %s1124 = sadd.s32 1, %s1120
              $region301: #{custom-call.2} parent=294 // loop_footer_branch
                %1119 = sbr.rel target = $region297
              $region302: #{custom-call.2} parent=294 // loop_exit
                _
            $region295: #{custom-call.2} parent=279 // pred_fallthru
              _
            // Predicated region
            $region303: #{custom-call.2} parent=279 // pred_check
              _
            $region304: #{custom-call.2} parent=279 // pred_check_branch
              %1130 = sbr.rel target = $region306
            $region305: #{custom-call.2} parent=279 // pred_region
              _
            $region306: #{custom-call.2} parent=279 // pred_fallthru
              _
          $region280: #{custom-call.2} parent=275 // pred_fallthru
            _
          // Predicated region
          $region281: #{custom-call.2} parent=275 // pred_check
            _
          $region282: #{custom-call.2} parent=275 // pred_check_branch
            %1104 = sbr.rel target = $region284
          $region283: #{custom-call.2} parent=275 // pred_region
            %s1106 = ssub.s32 256, 1
            loop: start=0, step=1, limit=1
            $region285: #{custom-call.2} parent=283 // loop_pre_header
              _
            $region286: #{custom-call.2} parent=283 // loop_header
              %s1108 = sphi 0, %s1112
              %p1109 = scmp.ge.s32.totalorder %s1108, 1
              %s1113 = sphi %s975, %s975
              %s1114 = sphi %s1098, %s1098
            $region287: #{custom-call.2} parent=283 // loop_header_branch
              %1111 = sbr.rel (%p1109) target = $region291
            $region288: #{custom-call.2} parent=283 // loop_body
              %v1115 = vld [vmem:[%s1113] sm:%s1106]
              %1116 = vst [vmem:[%s1114] sm:%s1106] %v1115
            $region289: #{custom-call.2} parent=283 // loop_footer
              %s1112 = sadd.s32 1, %s1108
            $region290: #{custom-call.2} parent=283 // loop_footer_branch
              %1107 = sbr.rel target = $region286
            $region291: #{custom-call.2} parent=283 // loop_exit
              _
          $region284: #{custom-call.2} parent=275 // pred_fallthru
            _
        $region276: #{custom-call.2} parent=155 // pred_fallthru
          _
        %1131 = vnop
        %s1132 = smul.addr %s17, 8
        %s1133 = scalar_lea.vmem %s8, %s1132
        // Predicated region
        $region307: #{custom-call.2} parent=155 // pred_check
          _
        $region308: #{custom-call.2} parent=155 // pred_check_branch
          %1135 = sbr.rel (0) target = $region310
        $region309: #{custom-call.2} parent=155 // pred_region
          // Predicated region
          $region311: #{custom-call.2} parent=309 // pred_check
            _
          $region312: #{custom-call.2} parent=309 // pred_check_branch
            %1137 = sbr.rel (0) target = $region314
          $region313: #{custom-call.2} parent=309 // pred_region
            // Predicated region
            $region326: #{custom-call.2} parent=313 // pred_check
              _
            $region327: #{custom-call.2} parent=313 // pred_check_branch
              %1153 = sbr.rel (0) target = $region329
            $region328: #{custom-call.2} parent=313 // pred_region
              loop: start=0, step=1, limit=1
              $region330: #{custom-call.2} parent=328 // loop_pre_header
                _
              $region331: #{custom-call.2} parent=328 // loop_header
                %s1155 = sphi 0, %s1159
                %p1156 = scmp.ge.s32.totalorder %s1155, 1
                %s1160 = sphi %s979, %s979
                %s1161 = sphi %s1133, %s1133
              $region332: #{custom-call.2} parent=328 // loop_header_branch
                %1158 = sbr.rel (%p1156) target = $region336
              $region333: #{custom-call.2} parent=328 // loop_body
                %v1162 = vld [vmem:[%s1160] sm:$0xff]
                %1163 = vst [vmem:[%s1161] sm:$0xff] %v1162
              $region334: #{custom-call.2} parent=328 // loop_footer
                %s1159 = sadd.s32 1, %s1155
              $region335: #{custom-call.2} parent=328 // loop_footer_branch
                %1154 = sbr.rel target = $region331
              $region336: #{custom-call.2} parent=328 // loop_exit
                _
            $region329: #{custom-call.2} parent=313 // pred_fallthru
              _
            // Predicated region
            $region337: #{custom-call.2} parent=313 // pred_check
              _
            $region338: #{custom-call.2} parent=313 // pred_check_branch
              %1165 = sbr.rel target = $region340
            $region339: #{custom-call.2} parent=313 // pred_region
              _
            $region340: #{custom-call.2} parent=313 // pred_fallthru
              _
          $region314: #{custom-call.2} parent=309 // pred_fallthru
            _
          // Predicated region
          $region315: #{custom-call.2} parent=309 // pred_check
            _
          $region316: #{custom-call.2} parent=309 // pred_check_branch
            %1139 = sbr.rel target = $region318
          $region317: #{custom-call.2} parent=309 // pred_region
            %s1141 = ssub.s32 256, 1
            loop: start=0, step=1, limit=1
            $region319: #{custom-call.2} parent=317 // loop_pre_header
              _
            $region320: #{custom-call.2} parent=317 // loop_header
              %s1143 = sphi 0, %s1147
              %p1144 = scmp.ge.s32.totalorder %s1143, 1
              %s1148 = sphi %s979, %s979
              %s1149 = sphi %s1133, %s1133
            $region321: #{custom-call.2} parent=317 // loop_header_branch
              %1146 = sbr.rel (%p1144) target = $region325
            $region322: #{custom-call.2} parent=317 // loop_body
              %v1150 = vld [vmem:[%s1148] sm:%s1141]
              %1151 = vst [vmem:[%s1149] sm:%s1141] %v1150
            $region323: #{custom-call.2} parent=317 // loop_footer
              %s1147 = sadd.s32 1, %s1143
            $region324: #{custom-call.2} parent=317 // loop_footer_branch
              %1142 = sbr.rel target = $region320
            $region325: #{custom-call.2} parent=317 // loop_exit
              _
          $region318: #{custom-call.2} parent=309 // pred_fallthru
            _
        $region310: #{custom-call.2} parent=155 // pred_fallthru
          _
        %1166 = vnop
        %s1167 = smul.addr %s17, 8
        %s1168 = scalar_lea.vmem %s9, %s1167
        // Predicated region
        $region341: #{custom-call.2} parent=155 // pred_check
          _
        $region342: #{custom-call.2} parent=155 // pred_check_branch
          %1170 = sbr.rel (0) target = $region344
        $region343: #{custom-call.2} parent=155 // pred_region
          // Predicated region
          $region345: #{custom-call.2} parent=343 // pred_check
            _
          $region346: #{custom-call.2} parent=343 // pred_check_branch
            %1172 = sbr.rel (0) target = $region348
          $region347: #{custom-call.2} parent=343 // pred_region
            // Predicated region
            $region360: #{custom-call.2} parent=347 // pred_check
              _
            $region361: #{custom-call.2} parent=347 // pred_check_branch
              %1188 = sbr.rel (0) target = $region363
            $region362: #{custom-call.2} parent=347 // pred_region
              loop: start=0, step=1, limit=1
              $region364: #{custom-call.2} parent=362 // loop_pre_header
                _
              $region365: #{custom-call.2} parent=362 // loop_header
                %s1190 = sphi 0, %s1194
                %p1191 = scmp.ge.s32.totalorder %s1190, 1
                %s1195 = sphi %s983, %s983
                %s1196 = sphi %s1168, %s1168
              $region366: #{custom-call.2} parent=362 // loop_header_branch
                %1193 = sbr.rel (%p1191) target = $region370
              $region367: #{custom-call.2} parent=362 // loop_body
                %v1197 = vld [vmem:[%s1195] sm:$0xff]
                %1198 = vst [vmem:[%s1196] sm:$0xff] %v1197
              $region368: #{custom-call.2} parent=362 // loop_footer
                %s1194 = sadd.s32 1, %s1190
              $region369: #{custom-call.2} parent=362 // loop_footer_branch
                %1189 = sbr.rel target = $region365
              $region370: #{custom-call.2} parent=362 // loop_exit
                _
            $region363: #{custom-call.2} parent=347 // pred_fallthru
              _
            // Predicated region
            $region371: #{custom-call.2} parent=347 // pred_check
              _
            $region372: #{custom-call.2} parent=347 // pred_check_branch
              %1200 = sbr.rel target = $region374
            $region373: #{custom-call.2} parent=347 // pred_region
              _
            $region374: #{custom-call.2} parent=347 // pred_fallthru
              _
          $region348: #{custom-call.2} parent=343 // pred_fallthru
            _
          // Predicated region
          $region349: #{custom-call.2} parent=343 // pred_check
            _
          $region350: #{custom-call.2} parent=343 // pred_check_branch
            %1174 = sbr.rel target = $region352
          $region351: #{custom-call.2} parent=343 // pred_region
            %s1176 = ssub.s32 256, 1
            loop: start=0, step=1, limit=1
            $region353: #{custom-call.2} parent=351 // loop_pre_header
              _
            $region354: #{custom-call.2} parent=351 // loop_header
              %s1178 = sphi 0, %s1182
              %p1179 = scmp.ge.s32.totalorder %s1178, 1
              %s1183 = sphi %s983, %s983
              %s1184 = sphi %s1168, %s1168
            $region355: #{custom-call.2} parent=351 // loop_header_branch
              %1181 = sbr.rel (%p1179) target = $region359
            $region356: #{custom-call.2} parent=351 // loop_body
              %v1185 = vld [vmem:[%s1183] sm:%s1176]
              %1186 = vst [vmem:[%s1184] sm:%s1176] %v1185
            $region357: #{custom-call.2} parent=351 // loop_footer
              %s1182 = sadd.s32 1, %s1178
            $region358: #{custom-call.2} parent=351 // loop_footer_branch
              %1177 = sbr.rel target = $region354
            $region359: #{custom-call.2} parent=351 // loop_exit
              _
          $region352: #{custom-call.2} parent=343 // pred_fallthru
            _
        $region344: #{custom-call.2} parent=155 // pred_fallthru
          _
        %1201 = vnop
      $region156: #{custom-call.2} parent=5 // pred_fallthru
        _
      %p1202 = scmp.le.s32.totalorder 2, %s12
      // Predicated region
      $region375: #{custom-call.2} parent=5 // pred_check
        %p1203 = pneg %p1202
      $region376: #{custom-call.2} parent=5 // pred_check_branch
        %1205 = sbr.rel (%p1203) target = $region378
      $region377: #{custom-call.2} parent=5 // pred_region
        %s1206 = ssub.s32 %s12, 2
        // Predicated region
        $region379: #{custom-call.2} parent=377 // pred_check
          %p1207 = pneg %p43
        $region380: #{custom-call.2} parent=377 // pred_check_branch
          %1209 = sbr.rel (%p1207) target = $region382
        $region381: #{custom-call.2} parent=377 // pred_region
          %s1210 = sand.u32 %s28, 1
          %s1211 = sand.u32 %s28, 1
          %s1212 = smul.addr %s1211, 2
          %s1213 = scalar_lea.vmem [#allocation5], %s1212
        $region382: #{custom-call.2} parent=377 // pred_fallthru
          _
        // Predicated region
        $region383: #{custom-call.2} parent=377 // pred_check
          %p1214 = pneg %p71
        $region384: #{custom-call.2} parent=377 // pred_check_branch
          %1216 = sbr.rel (%p1214) target = $region386
        $region385: #{custom-call.2} parent=377 // pred_region
          %s1217 = sand.u32 %s56, 1
          %s1218 = sand.u32 %s56, 1
          %s1219 = smul.addr %s1218, 2
          %s1220 = scalar_lea.vmem [#allocation7], %s1219
        $region386: #{custom-call.2} parent=377 // pred_fallthru
          _
        %s1221 = sand.u32 %s18, 1
        %s1222 = sand.u32 %s18, 1
        %s1223 = smul.addr %s1222, 8
        %s1224 = scalar_lea.vmem [#allocation8], %s1223
        %s1225 = sand.u32 %s18, 1
        %s1226 = sand.u32 %s18, 1
        %s1227 = smul.addr %s1226, 8
        %s1228 = scalar_lea.vmem [#allocation9], %s1227
        %s1229 = sand.u32 %s18, 1
        %s1230 = sand.u32 %s18, 1
        %s1231 = smul.addr %s1230, 8
        %s1232 = scalar_lea.vmem [#allocation10], %s1231
        %s1233 = sand.u32 %s18, 1
        %s1234 = sand.u32 %s18, 1
        %s1235 = smul.addr %s1234, 8
        %s1236 = scalar_lea.vmem [#allocation11], %s1235
      $region378: #{custom-call.2} parent=5 // pred_fallthru
        _
    $region6: #{custom-call.2} parent=1 // loop_footer
      %s16 = sadd.s32 1, %s12
    $region7: #{custom-call.2} parent=1 // loop_footer_branch
      %11 = sbr.rel target = $region3
    $region8: #{custom-call.2} parent=1 // loop_exit
      _

// kernel: squeeze.7
$region0: #{squeeze.7}
  %s0 = inlined_call_operand.vmem [shape: bf16[2,9], index: 0, kind: input, shape index: {}]
  %s1 = inlined_call_operand.vmem [shape: bf16[2,3,3], index: 1, kind: output, shape index: {}]
  $region1: #{squeeze.7} parent=0
    #allocation0 [shape = 'u8[8192]{0}', space=vmem, size = 0x2000, scoped, tag = 'scoped mem for output reshape']
    #allocation1 [shape = 'u8[4096]{0}', space=vmem, size = 0x1000, scoped, tag = 'scoped mem for input reshape']
    %s3 = smul.u32 1, 2
    %s4 = sshll.u32 1, %s3
    %s5 = ssub.s32 %s4, 1
    %s6 = sshrl.u32 %s5, 1
    %s7 = sor.u32 %s5, %s6
    %s8 = sand.u32 %s7, 85
    %s9 = sshrl.u32 %s8, 1
    %s10 = sor.u32 %s8, %s9
    %s11 = sand.u32 51, %s10
    %s12 = sshrl.u32 %s11, 2
    %s13 = sor.u32 %s11, %s12
    %s14 = sand.u32 15, %s13
    %v15 = vld [vmem:[%s0] sm:%s14]
    %v16 = vunpack.c.l.bf16 %v15
    %v17 = vunpack.c.h.bf16 %v15
    %18 = vst [vmem:[#allocation1] sm:%s5] %v16
    %v19 = vld [vmem:[#allocation1] sm:$0x3]
    %vm20 = vcmask 23552
    %21 = vst.msk [vmem:[#allocation0] ss:$8 sm:$0x3] %vm20, %v19
    %v22 = vld [vmem:[#allocation1] sm:$0x3]
    %23 = vrot.lane.b32.xlu0 %v22, 125
    %v24 = vpop.permute.xlu0 %23
    %vm25 = vcmask 23552
    %s26 = scalar_lea.vmem [#allocation0], 1
    %27 = vst.msk [vmem:[%s26] ss:$8 sm:$0x3] %vm25, %v24
    %v28 = vld [vmem:[#allocation1] sm:$0x3]
    %29 = vrot.lane.b32.xlu0 %v28, 122
    %v30 = vpop.permute.xlu0 %29
    %vm31 = vcmask 23552
    %s32 = scalar_lea.vmem [#allocation0], 2
    %33 = vst.msk [vmem:[%s32] ss:$8 sm:$0x3] %vm31, %v30
    %s35 = smul.u32 2, 2
    %s36 = sshll.u32 1, %s35
    %s37 = ssub.s32 %s36, 1
    %s38 = sshrl.u32 %s35, 1
    %v39 = vld [vmem:[#allocation0] sm:%s37]
    %v40 = vpack.c.bf16 0.0, %v39
    %s41 = sshll.u32 1, %s38
    %s42 = ssub.s32 %s41, 1
    %43 = vst [vmem:[%s1] sm:%s42] %v40
    %s44 = scalar_lea.vmem [#allocation0], 8
    %v45 = vld [vmem:[%s44] sm:%s37]
    %v46 = vpack.c.bf16 0.0, %v45
    %s47 = sshll.u32 1, %s38
    %s48 = ssub.s32 %s47, 1
    %s49 = scalar_lea.vmem %s1, 2
    %50 = vst [vmem:[%s49] sm:%s48] %v46

// kernel: tensor_dlt.1
$region0: #{tensor_dlt.1}
  #allocation0 [shape = 'u32[]', space=smem, size = 0x4, offset = 0x4, fixed_abs, tag = 'smem constant byte address 0x4 - core index']
  #allocation1 [shape = 'u32[144,128]{1,0:T(1,128)}', space=vmem, size = 0x12000, scoped, tag = 'internal scratch']
  %s0 = inlined_call_operand.vmem [shape: f32[2,4,2], index: 0, kind: input, shape index: {}]
  %s1 = inlined_call_operand.vmem [shape: f32[2,4,2], index: 1, kind: input, shape index: {}]
  %s2 = inlined_call_operand.vmem [shape: f32[9,8,2], index: 2, kind: input, shape index: {}]
  %s3 = inlined_call_operand.vmem [shape: f32[9,9,2], index: 3, kind: output, shape index: {}]
  %s4 = sld [smem:[#allocation0]]
  $region22: #{tensor_dlt.1} parent=0
    _
  %s6 = ssub.s32 1, %s4
  %s7 = scalar_select 0, %s6, %s4
  // Predicated region
  $region2: #{tensor_dlt.1} parent=0 // pred_check
    _
  $region3: #{tensor_dlt.1} parent=0 // pred_check_branch
    %9 = sbr.rel (0) target = $region5
  $region4: #{tensor_dlt.1} parent=0 // pred_region
    _
  $region5: #{tensor_dlt.1} parent=0 // pred_fallthru
    _
  // Predicated region
  $region6: #{tensor_dlt.1} parent=0 // pred_check
    _
  $region7: #{tensor_dlt.1} parent=0 // pred_check_branch
    %11 = sbr.rel (0) target = $region9
  $region8: #{tensor_dlt.1} parent=0 // pred_region
    _
  $region9: #{tensor_dlt.1} parent=0 // pred_fallthru
    _
  // Predicated region
  $region10: #{tensor_dlt.1} parent=0 // pred_check
    _
  $region11: #{tensor_dlt.1} parent=0 // pred_check_branch
    %13 = sbr.rel (0) target = $region13
  $region12: #{tensor_dlt.1} parent=0 // pred_region
    _
  $region13: #{tensor_dlt.1} parent=0 // pred_fallthru
    _
  %v14 = vld [vmem:[%s0] sm:$0xf]
  %v15 = vld [vmem:[%s0 + $0x4] sm:$0xf]
  %v16 = vld [vmem:[%s1] sm:$0xf]
  %v17 = vld [vmem:[%s1 + $0x4] sm:$0xf]
  %vm18 = vcmask 11264
  %v19 = vsel %vm18, %v14, 0.0
  %v20 = vrot.slane %v19, 4
  %v21 = vadd.f32 %v19, %v20
  %v22 = vrot.slane %v21, 2
  %v23 = vadd.f32 %v21, %v22
  %v24 = vrot.slane %v23, 1
  %v25 = vadd.f32 %v23, %v24
  %v26 = vsel %vm18, %v15, 0.0
  %v27 = vrot.slane %v26, 4
  %v28 = vadd.f32 %v26, %v27
  %v29 = vrot.slane %v28, 2
  %v30 = vadd.f32 %v28, %v29
  %v31 = vrot.slane %v30, 1
  %v32 = vadd.f32 %v30, %v31
  %v33 = vrcp.pop 4.0
  %v34 = vmul.f32 %v25, %v33
  %v35 = vmul.f32 %v32, %v33
  %v36 = vsub.f32 %v14, %v34
  %v37 = vsub.f32 %v15, %v35
  %v38 = vmul.f32 %v36, %v36
  %v39 = vmul.f32 %v37, %v37
  %v40 = vsel %vm18, %v38, 0.0
  %v41 = vsel %vm18, %v39, 0.0
  %v42 = vadd.f32 %v40, %v41
  %v43 = vrsqrt.pop %v42
  %v44 = vmul.f32 %v42, %v43
  %vm45 = vcmp.eq.f32.partialorder %v42, inf
  %v46 = vsel %vm45, %v42, %v44
  %vm47 = vcmp.eq.f32.partialorder %v42, 0.0
  %v48 = vand.u32 %v42, 2147483648
  %v49 = vsel %vm47, %v48, %v46
  %v50 = vsel %vm18, %v49, 0.0
  %v51 = vrot.slane %v50, 4
  %v52 = vadd.f32 %v50, %v51
  %v53 = vrot.slane %v52, 2
  %v54 = vadd.f32 %v52, %v53
  %v55 = vrot.slane %v54, 1
  %v56 = vadd.f32 %v54, %v55
  %v57 = vmul.f32 %v56, %v33
  %v58 = vadd.f32 %v57, 1e-08
  %v59 = vrcp.pop %v58
  %v60 = vmul.f32 1.4142135, %v59
  %v61 = vmul.f32 %v36, %v60
  %v62 = vmul.f32 %v37, %v60
  %v63 = vsel %vm18, %v16, 0.0
  %v64 = vrot.slane %v63, 4
  %v65 = vadd.f32 %v63, %v64
  %v66 = vrot.slane %v65, 2
  %v67 = vadd.f32 %v65, %v66
  %v68 = vrot.slane %v67, 1
  %v69 = vadd.f32 %v67, %v68
  %v70 = vsel %vm18, %v17, 0.0
  %v71 = vrot.slane %v70, 4
  %v72 = vadd.f32 %v70, %v71
  %v73 = vrot.slane %v72, 2
  %v74 = vadd.f32 %v72, %v73
  %v75 = vrot.slane %v74, 1
  %v76 = vadd.f32 %v74, %v75
  %v77 = vmul.f32 %v69, %v33
  %v78 = vmul.f32 %v76, %v33
  %v79 = vsub.f32 %v16, %v77
  %v80 = vsub.f32 %v17, %v78
  %v81 = vmul.f32 %v79, %v79
  %v82 = vmul.f32 %v80, %v80
  %v83 = vsel %vm18, %v81, 0.0
  %v84 = vsel %vm18, %v82, 0.0
  %v85 = vadd.f32 %v83, %v84
  %v86 = vrsqrt.pop %v85
  %v87 = vmul.f32 %v85, %v86
  %vm88 = vcmp.eq.f32.partialorder %v85, inf
  %v89 = vsel %vm88, %v85, %v87
  %vm90 = vcmp.eq.f32.partialorder %v85, 0.0
  %v91 = vand.u32 %v85, 2147483648
  %v92 = vsel %vm90, %v91, %v89
  %v93 = vsel %vm18, %v92, 0.0
  %v94 = vrot.slane %v93, 4
  %v95 = vadd.f32 %v93, %v94
  %v96 = vrot.slane %v95, 2
  %v97 = vadd.f32 %v95, %v96
  %v98 = vrot.slane %v97, 1
  %v99 = vadd.f32 %v97, %v98
  %v100 = vmul.f32 %v99, %v33
  %v101 = vadd.f32 %v100, 1e-08
  %v102 = vrcp.pop %v101
  %v103 = vmul.f32 1.4142135, %v102
  %v104 = vmul.f32 %v79, %v103
  %v105 = vmul.f32 %v80, %v103
  %v107 = vrot.slane %v61, 4
  %vm109 = vcmask 1043456
  %v110 = vsel %vm109, 0.0, %v107
  %v112 = vrot.slane %v62, 4
  %v114 = vsel %vm109, 0.0, %v112
  %v115 = vsel %vm109, 0.0, 1.0
  %v116 = vsub.f32 0.0, %v61
  %v117 = vsel %vm109, %v116, 0.0
  %v118 = vsub.f32 0.0, %v62
  %v119 = vsel %vm109, %v118, 0.0
  %v120 = vsel %vm109, -1.0, 0.0
  %v121 = vmul.f32 %v105, %v61
  %v122 = vsub.f32 0.0, %v104
  %v123 = vmul.f32 %v122, %v61
  %v125 = vrot.slane %v123, 4
  %v127 = vsel %vm109, %v121, %v125
  %v128 = vmul.f32 %v105, %v62
  %v129 = vmul.f32 %v122, %v62
  %v131 = vrot.slane %v129, 4
  %v133 = vsel %vm109, %v128, %v131
  %v135 = vrot.slane %v122, 4
  %v137 = vsel %vm109, %v105, %v135
  %v138 = vld [vmem:[%s2] sm:$0xff]
  %v139 = vld [vmem:[%s2 + $0x8] sm:$0xff]
  %v140 = vld [vmem:[%s2 + $0x10] sm:$0xff]
  %v141 = vld [vmem:[%s2 + $0x18] sm:$0xff]
  %v142 = vld [vmem:[%s2 + $0x20] sm:$0xff]
  %v143 = vld [vmem:[%s2 + $0x28] sm:$0xff]
  %v144 = vld [vmem:[%s2 + $0x30] sm:$0xff]
  %v145 = vld [vmem:[%s2 + $0x38] sm:$0xff]
  %v146 = vld [vmem:[%s2 + $0x40] sm:$0xff]
  %v147 = vmul.f32 %v138, 0.0001
  %v148 = vmul.f32 %v139, 0.0001
  %v149 = vmul.f32 %v140, 0.0001
  %v150 = vmul.f32 %v141, 0.0001
  %v151 = vmul.f32 %v142, 0.0001
  %v152 = vmul.f32 %v143, 0.0001
  %v153 = vmul.f32 %v144, 0.0001
  %v154 = vmul.f32 %v145, 0.0001
  %v155 = vmul.f32 %v146, 0.0001
  %v156 = vadd.f32 %v110, %v147
  %v157 = vadd.f32 %v114, %v148
  %v158 = vadd.f32 %v115, %v149
  %v159 = vadd.f32 %v117, %v150
  %v160 = vadd.f32 %v119, %v151
  %v161 = vadd.f32 %v120, %v152
  %v162 = vadd.f32 %v127, %v153
  %v163 = vadd.f32 %v133, %v154
  %v164 = vadd.f32 %v137, %v155
  %v165 = vmul.f32 %v156, %v156
  %vm166 = vcmask 15360
  %v167 = vsel %vm166, %v165, 0.0
  %v168 = vrot.slane %v167, 4
  %v169 = vadd.f32 %v167, %v168
  %v170 = vrot.slane %v169, 2
  %v171 = vadd.f32 %v169, %v170
  %v172 = vrot.slane %v171, 1
  %v173 = vadd.f32 %v171, %v172
  %v174 = vmul.f32 %v156, %v157
  %v175 = vsel %vm166, %v174, 0.0
  %v176 = vrot.slane %v175, 4
  %v177 = vadd.f32 %v175, %v176
  %v178 = vrot.slane %v177, 2
  %v179 = vadd.f32 %v177, %v178
  %v180 = vrot.slane %v179, 1
  %v181 = vadd.f32 %v179, %v180
  %v182 = vmul.f32 %v156, %v158
  %v183 = vsel %vm166, %v182, 0.0
  %v184 = vrot.slane %v183, 4
  %v185 = vadd.f32 %v183, %v184
  %v186 = vrot.slane %v185, 2
  %v187 = vadd.f32 %v185, %v186
  %v188 = vrot.slane %v187, 1
  %v189 = vadd.f32 %v187, %v188
  %v190 = vmul.f32 %v156, %v159
  %v191 = vsel %vm166, %v190, 0.0
  %v192 = vrot.slane %v191, 4
  %v193 = vadd.f32 %v191, %v192
  %v194 = vrot.slane %v193, 2
  %v195 = vadd.f32 %v193, %v194
  %v196 = vrot.slane %v195, 1
  %v197 = vadd.f32 %v195, %v196
  %v198 = vmul.f32 %v156, %v160
  %v199 = vsel %vm166, %v198, 0.0
  %v200 = vrot.slane %v199, 4
  %v201 = vadd.f32 %v199, %v200
  %v202 = vrot.slane %v201, 2
  %v203 = vadd.f32 %v201, %v202
  %v204 = vrot.slane %v203, 1
  %v205 = vadd.f32 %v203, %v204
  %v206 = vmul.f32 %v156, %v161
  %v207 = vsel %vm166, %v206, 0.0
  %v208 = vrot.slane %v207, 4
  %v209 = vadd.f32 %v207, %v208
  %v210 = vrot.slane %v209, 2
  %v211 = vadd.f32 %v209, %v210
  %v212 = vrot.slane %v211, 1
  %v213 = vadd.f32 %v211, %v212
  %v214 = vmul.f32 %v156, %v162
  %v215 = vsel %vm166, %v214, 0.0
  %v216 = vrot.slane %v215, 4
  %v217 = vadd.f32 %v215, %v216
  %v218 = vrot.slane %v217, 2
  %v219 = vadd.f32 %v217, %v218
  %v220 = vrot.slane %v219, 1
  %v221 = vadd.f32 %v219, %v220
  %v222 = vmul.f32 %v156, %v163
  %v223 = vsel %vm166, %v222, 0.0
  %v224 = vrot.slane %v223, 4
  %v225 = vadd.f32 %v223, %v224
  %v226 = vrot.slane %v225, 2
  %v227 = vadd.f32 %v225, %v226
  %v228 = vrot.slane %v227, 1
  %v229 = vadd.f32 %v227, %v228
  %v230 = vmul.f32 %v156, %v164
  %v231 = vsel %vm166, %v230, 0.0
  %v232 = vrot.slane %v231, 4
  %v233 = vadd.f32 %v231, %v232
  %v234 = vrot.slane %v233, 2
  %v235 = vadd.f32 %v233, %v234
  %v236 = vrot.slane %v235, 1
  %v237 = vadd.f32 %v235, %v236
  %v238 = vmul.f32 %v157, %v157
  %v239 = vsel %vm166, %v238, 0.0
  %v240 = vrot.slane %v239, 4
  %v241 = vadd.f32 %v239, %v240
  %v242 = vrot.slane %v241, 2
  %v243 = vadd.f32 %v241, %v242
  %v244 = vrot.slane %v243, 1
  %v245 = vadd.f32 %v243, %v244
  %v246 = vmul.f32 %v157, %v158
  %v247 = vsel %vm166, %v246, 0.0
  %v248 = vrot.slane %v247, 4
  %v249 = vadd.f32 %v247, %v248
  %v250 = vrot.slane %v249, 2
  %v251 = vadd.f32 %v249, %v250
  %v252 = vrot.slane %v251, 1
  %v253 = vadd.f32 %v251, %v252
  %v254 = vmul.f32 %v157, %v159
  %v255 = vsel %vm166, %v254, 0.0
  %v256 = vrot.slane %v255, 4
  %v257 = vadd.f32 %v255, %v256
  %v258 = vrot.slane %v257, 2
  %v259 = vadd.f32 %v257, %v258
  %v260 = vrot.slane %v259, 1
  %v261 = vadd.f32 %v259, %v260
  %v262 = vmul.f32 %v157, %v160
  %v263 = vsel %vm166, %v262, 0.0
  %v264 = vrot.slane %v263, 4
  %v265 = vadd.f32 %v263, %v264
  %v266 = vrot.slane %v265, 2
  %v267 = vadd.f32 %v265, %v266
  %v268 = vrot.slane %v267, 1
  %v269 = vadd.f32 %v267, %v268
  %v270 = vmul.f32 %v157, %v161
  %v271 = vsel %vm166, %v270, 0.0
  %v272 = vrot.slane %v271, 4
  %v273 = vadd.f32 %v271, %v272
  %v274 = vrot.slane %v273, 2
  %v275 = vadd.f32 %v273, %v274
  %v276 = vrot.slane %v275, 1
  %v277 = vadd.f32 %v275, %v276
  %v278 = vmul.f32 %v157, %v162
  %v279 = vsel %vm166, %v278, 0.0
  %v280 = vrot.slane %v279, 4
  %v281 = vadd.f32 %v279, %v280
  %v282 = vrot.slane %v281, 2
  %v283 = vadd.f32 %v281, %v282
  %v284 = vrot.slane %v283, 1
  %v285 = vadd.f32 %v283, %v284
  %v286 = vmul.f32 %v157, %v163
  %v287 = vsel %vm166, %v286, 0.0
  %v288 = vrot.slane %v287, 4
  %v289 = vadd.f32 %v287, %v288
  %v290 = vrot.slane %v289, 2
  %v291 = vadd.f32 %v289, %v290
  %v292 = vrot.slane %v291, 1
  %v293 = vadd.f32 %v291, %v292
  %v294 = vmul.f32 %v157, %v164
  %v295 = vsel %vm166, %v294, 0.0
  %v296 = vrot.slane %v295, 4
  %v297 = vadd.f32 %v295, %v296
  %v298 = vrot.slane %v297, 2
  %v299 = vadd.f32 %v297, %v298
  %v300 = vrot.slane %v299, 1
  %v301 = vadd.f32 %v299, %v300
  %v302 = vmul.f32 %v158, %v158
  %v303 = vsel %vm166, %v302, 0.0
  %v304 = vrot.slane %v303, 4
  %v305 = vadd.f32 %v303, %v304
  %v306 = vrot.slane %v305, 2
  %v307 = vadd.f32 %v305, %v306
  %v308 = vrot.slane %v307, 1
  %v309 = vadd.f32 %v307, %v308
  %v310 = vmul.f32 %v158, %v159
  %v311 = vsel %vm166, %v310, 0.0
  %v312 = vrot.slane %v311, 4
  %v313 = vadd.f32 %v311, %v312
  %v314 = vrot.slane %v313, 2
  %v315 = vadd.f32 %v313, %v314
  %v316 = vrot.slane %v315, 1
  %v317 = vadd.f32 %v315, %v316
  %v318 = vmul.f32 %v158, %v160
  %v319 = vsel %vm166, %v318, 0.0
  %v320 = vrot.slane %v319, 4
  %v321 = vadd.f32 %v319, %v320
  %v322 = vrot.slane %v321, 2
  %v323 = vadd.f32 %v321, %v322
  %v324 = vrot.slane %v323, 1
  %v325 = vadd.f32 %v323, %v324
  %v326 = vmul.f32 %v158, %v161
  %v327 = vsel %vm166, %v326, 0.0
  %v328 = vrot.slane %v327, 4
  %v329 = vadd.f32 %v327, %v328
  %v330 = vrot.slane %v329, 2
  %v331 = vadd.f32 %v329, %v330
  %v332 = vrot.slane %v331, 1
  %v333 = vadd.f32 %v331, %v332
  %v334 = vmul.f32 %v158, %v162
  %v335 = vsel %vm166, %v334, 0.0
  %v336 = vrot.slane %v335, 4
  %v337 = vadd.f32 %v335, %v336
  %v338 = vrot.slane %v337, 2
  %v339 = vadd.f32 %v337, %v338
  %v340 = vrot.slane %v339, 1
  %v341 = vadd.f32 %v339, %v340
  %v342 = vmul.f32 %v158, %v163
  %v343 = vsel %vm166, %v342, 0.0
  %v344 = vrot.slane %v343, 4
  %v345 = vadd.f32 %v343, %v344
  %v346 = vrot.slane %v345, 2
  %v347 = vadd.f32 %v345, %v346
  %v348 = vrot.slane %v347, 1
  %v349 = vadd.f32 %v347, %v348
  %v350 = vmul.f32 %v158, %v164
  %v351 = vsel %vm166, %v350, 0.0
  %v352 = vrot.slane %v351, 4
  %v353 = vadd.f32 %v351, %v352
  %v354 = vrot.slane %v353, 2
  %v355 = vadd.f32 %v353, %v354
  %v356 = vrot.slane %v355, 1
  %v357 = vadd.f32 %v355, %v356
  %v358 = vmul.f32 %v159, %v159
  %v359 = vsel %vm166, %v358, 0.0
  %v360 = vrot.slane %v359, 4
  %v361 = vadd.f32 %v359, %v360
  %v362 = vrot.slane %v361, 2
  %v363 = vadd.f32 %v361, %v362
  %v364 = vrot.slane %v363, 1
  %v365 = vadd.f32 %v363, %v364
  %v366 = vmul.f32 %v159, %v160
  %v367 = vsel %vm166, %v366, 0.0
  %v368 = vrot.slane %v367, 4
  %v369 = vadd.f32 %v367, %v368
  %v370 = vrot.slane %v369, 2
  %v371 = vadd.f32 %v369, %v370
  %v372 = vrot.slane %v371, 1
  %v373 = vadd.f32 %v371, %v372
  %v374 = vmul.f32 %v159, %v161
  %v375 = vsel %vm166, %v374, 0.0
  %v376 = vrot.slane %v375, 4
  %v377 = vadd.f32 %v375, %v376
  %v378 = vrot.slane %v377, 2
  %v379 = vadd.f32 %v377, %v378
  %v380 = vrot.slane %v379, 1
  %v381 = vadd.f32 %v379, %v380
  %v382 = vmul.f32 %v159, %v162
  %v383 = vsel %vm166, %v382, 0.0
  %v384 = vrot.slane %v383, 4
  %v385 = vadd.f32 %v383, %v384
  %v386 = vrot.slane %v385, 2
  %v387 = vadd.f32 %v385, %v386
  %v388 = vrot.slane %v387, 1
  %v389 = vadd.f32 %v387, %v388
  %v390 = vmul.f32 %v159, %v163
  %v391 = vsel %vm166, %v390, 0.0
  %v392 = vrot.slane %v391, 4
  %v393 = vadd.f32 %v391, %v392
  %v394 = vrot.slane %v393, 2
  %v395 = vadd.f32 %v393, %v394
  %v396 = vrot.slane %v395, 1
  %v397 = vadd.f32 %v395, %v396
  %v398 = vmul.f32 %v159, %v164
  %v399 = vsel %vm166, %v398, 0.0
  %v400 = vrot.slane %v399, 4
  %v401 = vadd.f32 %v399, %v400
  %v402 = vrot.slane %v401, 2
  %v403 = vadd.f32 %v401, %v402
  %v404 = vrot.slane %v403, 1
  %v405 = vadd.f32 %v403, %v404
  %v406 = vmul.f32 %v160, %v160
  %v407 = vsel %vm166, %v406, 0.0
  %v408 = vrot.slane %v407, 4
  %v409 = vadd.f32 %v407, %v408
  %v410 = vrot.slane %v409, 2
  %v411 = vadd.f32 %v409, %v410
  %v412 = vrot.slane %v411, 1
  %v413 = vadd.f32 %v411, %v412
  %v414 = vmul.f32 %v160, %v161
  %v415 = vsel %vm166, %v414, 0.0
  %v416 = vrot.slane %v415, 4
  %v417 = vadd.f32 %v415, %v416
  %v418 = vrot.slane %v417, 2
  %v419 = vadd.f32 %v417, %v418
  %v420 = vrot.slane %v419, 1
  %v421 = vadd.f32 %v419, %v420
  %v422 = vmul.f32 %v160, %v162
  %v423 = vsel %vm166, %v422, 0.0
  %v424 = vrot.slane %v423, 4
  %v425 = vadd.f32 %v423, %v424
  %v426 = vrot.slane %v425, 2
  %v427 = vadd.f32 %v425, %v426
  %v428 = vrot.slane %v427, 1
  %v429 = vadd.f32 %v427, %v428
  %v430 = vmul.f32 %v160, %v163
  %v431 = vsel %vm166, %v430, 0.0
  %v432 = vrot.slane %v431, 4
  %v433 = vadd.f32 %v431, %v432
  %v434 = vrot.slane %v433, 2
  %v435 = vadd.f32 %v433, %v434
  %v436 = vrot.slane %v435, 1
  %v437 = vadd.f32 %v435, %v436
  %v438 = vmul.f32 %v160, %v164
  %v439 = vsel %vm166, %v438, 0.0
  %v440 = vrot.slane %v439, 4
  %v441 = vadd.f32 %v439, %v440
  %v442 = vrot.slane %v441, 2
  %v443 = vadd.f32 %v441, %v442
  %v444 = vrot.slane %v443, 1
  %v445 = vadd.f32 %v443, %v444
  %v446 = vmul.f32 %v161, %v161
  %v447 = vsel %vm166, %v446, 0.0
  %v448 = vrot.slane %v447, 4
  %v449 = vadd.f32 %v447, %v448
  %v450 = vrot.slane %v449, 2
  %v451 = vadd.f32 %v449, %v450
  %v452 = vrot.slane %v451, 1
  %v453 = vadd.f32 %v451, %v452
  %v454 = vmul.f32 %v161, %v162
  %v455 = vsel %vm166, %v454, 0.0
  %v456 = vrot.slane %v455, 4
  %v457 = vadd.f32 %v455, %v456
  %v458 = vrot.slane %v457, 2
  %v459 = vadd.f32 %v457, %v458
  %v460 = vrot.slane %v459, 1
  %v461 = vadd.f32 %v459, %v460
  %v462 = vmul.f32 %v161, %v163
  %v463 = vsel %vm166, %v462, 0.0
  %v464 = vrot.slane %v463, 4
  %v465 = vadd.f32 %v463, %v464
  %v466 = vrot.slane %v465, 2
  %v467 = vadd.f32 %v465, %v466
  %v468 = vrot.slane %v467, 1
  %v469 = vadd.f32 %v467, %v468
  %v470 = vmul.f32 %v161, %v164
  %v471 = vsel %vm166, %v470, 0.0
  %v472 = vrot.slane %v471, 4
  %v473 = vadd.f32 %v471, %v472
  %v474 = vrot.slane %v473, 2
  %v475 = vadd.f32 %v473, %v474
  %v476 = vrot.slane %v475, 1
  %v477 = vadd.f32 %v475, %v476
  %v478 = vmul.f32 %v162, %v162
  %v479 = vsel %vm166, %v478, 0.0
  %v480 = vrot.slane %v479, 4
  %v481 = vadd.f32 %v479, %v480
  %v482 = vrot.slane %v481, 2
  %v483 = vadd.f32 %v481, %v482
  %v484 = vrot.slane %v483, 1
  %v485 = vadd.f32 %v483, %v484
  %v486 = vmul.f32 %v162, %v163
  %v487 = vsel %vm166, %v486, 0.0
  %v488 = vrot.slane %v487, 4
  %v489 = vadd.f32 %v487, %v488
  %v490 = vrot.slane %v489, 2
  %v491 = vadd.f32 %v489, %v490
  %v492 = vrot.slane %v491, 1
  %v493 = vadd.f32 %v491, %v492
  %v494 = vmul.f32 %v162, %v164
  %v495 = vsel %vm166, %v494, 0.0
  %v496 = vrot.slane %v495, 4
  %v497 = vadd.f32 %v495, %v496
  %v498 = vrot.slane %v497, 2
  %v499 = vadd.f32 %v497, %v498
  %v500 = vrot.slane %v499, 1
  %v501 = vadd.f32 %v499, %v500
  %v502 = vmul.f32 %v163, %v163
  %v503 = vsel %vm166, %v502, 0.0
  %v504 = vrot.slane %v503, 4
  %v505 = vadd.f32 %v503, %v504
  %v506 = vrot.slane %v505, 2
  %v507 = vadd.f32 %v505, %v506
  %v508 = vrot.slane %v507, 1
  %v509 = vadd.f32 %v507, %v508
  %v510 = vmul.f32 %v163, %v164
  %v511 = vsel %vm166, %v510, 0.0
  %v512 = vrot.slane %v511, 4
  %v513 = vadd.f32 %v511, %v512
  %v514 = vrot.slane %v513, 2
  %v515 = vadd.f32 %v513, %v514
  %v516 = vrot.slane %v515, 1
  %v517 = vadd.f32 %v515, %v516
  %v518 = vmul.f32 %v164, %v164
  %v519 = vsel %vm166, %v518, 0.0
  %v520 = vrot.slane %v519, 4
  %v521 = vadd.f32 %v519, %v520
  %v522 = vrot.slane %v521, 2
  %v523 = vadd.f32 %v521, %v522
  %v524 = vrot.slane %v523, 1
  %v525 = vadd.f32 %v523, %v524
  %vm526 = vcmask 1040384
  %v527 = vsel %vm526, %v173, %v181
  %vm528 = vcmask 1041408
  %v529 = vsel %vm528, %v527, %v189
  %vm530 = vcmask 1042432
  %v531 = vsel %vm530, %v529, %v197
  %v532 = vsel %vm109, %v531, %v205
  %vm533 = vcmask 1044480
  %v534 = vsel %vm533, %v532, %v213
  %vm535 = vcmask 1045504
  %v536 = vsel %vm535, %v534, %v221
  %vm537 = vcmask 1046528
  %v538 = vsel %vm537, %v536, %v229
  %v539 = vsel %vm526, %v181, %v245
  %v540 = vsel %vm528, %v539, %v253
  %v541 = vsel %vm530, %v540, %v261
  %v542 = vsel %vm109, %v541, %v269
  %v543 = vsel %vm533, %v542, %v277
  %v544 = vsel %vm535, %v543, %v285
  %v545 = vsel %vm537, %v544, %v293
  %v546 = vsel %vm526, %v189, %v253
  %v547 = vsel %vm528, %v546, %v309
  %v548 = vsel %vm530, %v547, %v317
  %v549 = vsel %vm109, %v548, %v325
  %v550 = vsel %vm533, %v549, %v333
  %v551 = vsel %vm535, %v550, %v341
  %v552 = vsel %vm537, %v551, %v349
  %v553 = vsel %vm526, %v197, %v261
  %v554 = vsel %vm528, %v553, %v317
  %v555 = vsel %vm530, %v554, %v365
  %v556 = vsel %vm109, %v555, %v373
  %v557 = vsel %vm533, %v556, %v381
  %v558 = vsel %vm535, %v557, %v389
  %v559 = vsel %vm537, %v558, %v397
  %v560 = vsel %vm526, %v205, %v269
  %v561 = vsel %vm528, %v560, %v325
  %v562 = vsel %vm530, %v561, %v373
  %v563 = vsel %vm109, %v562, %v413
  %v564 = vsel %vm533, %v563, %v421
  %v565 = vsel %vm535, %v564, %v429
  %v566 = vsel %vm537, %v565, %v437
  %v567 = vsel %vm526, %v213, %v277
  %v568 = vsel %vm528, %v567, %v333
  %v569 = vsel %vm530, %v568, %v381
  %v570 = vsel %vm109, %v569, %v421
  %v571 = vsel %vm533, %v570, %v453
  %v572 = vsel %vm535, %v571, %v461
  %v573 = vsel %vm537, %v572, %v469
  %v574 = vsel %vm526, %v221, %v285
  %v575 = vsel %vm528, %v574, %v341
  %v576 = vsel %vm530, %v575, %v389
  %v577 = vsel %vm109, %v576, %v429
  %v578 = vsel %vm533, %v577, %v461
  %v579 = vsel %vm535, %v578, %v485
  %v580 = vsel %vm537, %v579, %v493
  %v581 = vsel %vm526, %v229, %v293
  %v582 = vsel %vm528, %v581, %v349
  %v583 = vsel %vm530, %v582, %v397
  %v584 = vsel %vm109, %v583, %v437
  %v585 = vsel %vm533, %v584, %v469
  %v586 = vsel %vm535, %v585, %v493
  %v587 = vsel %vm537, %v586, %v509
  %v588 = vsel %vm526, %v237, %v301
  %v589 = vsel %vm528, %v588, %v357
  %v590 = vsel %vm530, %v589, %v405
  %v591 = vsel %vm109, %v590, %v445
  %v592 = vsel %vm533, %v591, %v477
  %v593 = vsel %vm535, %v592, %v501
  %v594 = vsel %vm537, %v593, %v517
  %595 = vst.msk [vmem:[%s3] sm:$0xff] %vm166, %v538
  %vm596 = vcmask 8192
  %597 = vst.msk [vmem:[%s3 + $0x8] sm:$0x1] %vm596, %v237
  %598 = vst.msk [vmem:[%s3 + $0x10] sm:$0xff] %vm166, %v545
  %599 = vst.msk [vmem:[%s3 + $0x18] sm:$0x1] %vm596, %v301
  %600 = vst.msk [vmem:[%s3 + $0x20] sm:$0xff] %vm166, %v552
  %601 = vst.msk [vmem:[%s3 + $0x28] sm:$0x1] %vm596, %v357
  %602 = vst.msk [vmem:[%s3 + $0x30] sm:$0xff] %vm166, %v559
  %603 = vst.msk [vmem:[%s3 + $0x38] sm:$0x1] %vm596, %v405
  %604 = vst.msk [vmem:[%s3 + $0x40] sm:$0xff] %vm166, %v566
  %605 = vst.msk [vmem:[%s3 + $0x48] sm:$0x1] %vm596, %v445
  %606 = vst.msk [vmem:[%s3 + $0x50] sm:$0xff] %vm166, %v573
  %607 = vst.msk [vmem:[%s3 + $0x58] sm:$0x1] %vm596, %v477
  %608 = vst.msk [vmem:[%s3 + $0x60] sm:$0xff] %vm166, %v580
  %609 = vst.msk [vmem:[%s3 + $0x68] sm:$0x1] %vm596, %v501
  %610 = vst.msk [vmem:[%s3 + $0x70] sm:$0xff] %vm166, %v587
  %611 = vst.msk [vmem:[%s3 + $0x78] sm:$0x1] %vm596, %v517
  %612 = vst.msk [vmem:[%s3 + $0x80] sm:$0xff] %vm166, %v594
  %613 = vst.msk [vmem:[%s3 + $0x88] sm:$0x1] %vm596, %v525
  // Predicated region
  $region14: #{tensor_dlt.1} parent=0 // pred_check
    _
  $region15: #{tensor_dlt.1} parent=0 // pred_check_branch
    %615 = sbr.rel (0) target = $region17
  $region16: #{tensor_dlt.1} parent=0 // pred_region
    _
  $region17: #{tensor_dlt.1} parent=0 // pred_fallthru
    _
  // Predicated region
  $region18: #{tensor_dlt.1} parent=0 // pred_check
    _
  $region19: #{tensor_dlt.1} parent=0 // pred_check_branch
    %617 = sbr.rel (0) target = $region21
  $region20: #{tensor_dlt.1} parent=0 // pred_region
    _
  $region21: #{tensor_dlt.1} parent=0 // pred_fallthru
    _

</llo_original>
